<compile_context>
chip_gen: v6e
topology: v6e:2x2x1
jax: 0.10.0
libtpu: 0.0.40
codegen_flags: <defaults>
</compile_context>

<pallas_src>
import math
import functools

import jax
import jax.numpy as jnp
from jax.experimental import pallas as pl
from jax.experimental.pallas import tpu as pltpu


# ----------------------------------------------------------------------------
# Helpers
# ----------------------------------------------------------------------------

def _pick_tile(dim, pref):
    """Use `pref` if it evenly divides `dim`, else fall back to the full dim."""
    if dim % pref == 0:
        return pref
    return dim


# ----------------------------------------------------------------------------
# Tiled linear: y = x @ w.T  with w in torch (out_features, in_features) layout
# ----------------------------------------------------------------------------

def _linear_kernel(x_ref, w_ref, o_ref, acc_ref):
    @pl.when(pl.program_id(2) == 0)
    def _():
        acc_ref[...] = jnp.zeros_like(acc_ref)

    # (tm, tk) x (tn, tk) contracted on the last dims -> (tm, tn); MXU handles the
    # "transposed B" form directly, so no HBM transpose of the weight is needed.
    acc_ref[...] += jax.lax.dot_general(
        x_ref[...], w_ref[...],
        (((1,), (1,)), ((), ())),
        preferred_element_type=jnp.float32,
    )

    @pl.when(pl.program_id(2) == pl.num_programs(2) - 1)
    def _():
        o_ref[...] = acc_ref[...].astype(o_ref.dtype)


def linear_pallas(x, w, *, tm_pref=256, tn_pref=256, tk_pref=512):
    """x: (M, K), w: (N, K) torch Linear layout -> (M, N) = x @ w.T."""
    M, K = x.shape
    N, K2 = w.shape
    assert K == K2
    tm = _pick_tile(M, tm_pref)
    tn = _pick_tile(N, tn_pref)
    tk = _pick_tile(K, tk_pref)
    grid = (M // tm, N // tn, K // tk)
    itemsize = x.dtype.itemsize
    cost = pl.CostEstimate(
        flops=2 * M * N * K,
        transcendentals=0,
        bytes_accessed=(M * K + N * K + M * N) * itemsize,
    )
    return pl.pallas_call(
        _linear_kernel,
        out_shape=jax.ShapeDtypeStruct((M, N), x.dtype),
        grid=grid,
        in_specs=[
            pl.BlockSpec((tm, tk), lambda i, j, k: (i, k)),
            pl.BlockSpec((tn, tk), lambda i, j, k: (j, k)),
        ],
        out_specs=pl.BlockSpec((tm, tn), lambda i, j, k: (i, j)),
        scratch_shapes=[pltpu.VMEM((tm, tn), jnp.float32)],
        compiler_params=pltpu.CompilerParams(
            dimension_semantics=("parallel", "parallel", "arbitrary"),
            vmem_limit_bytes=32 * 1024 * 1024,
        ),
        cost_estimate=cost,
    )(x, w)


# ----------------------------------------------------------------------------
# Flash-style causal attention, all heads of one batch per grid step
# ----------------------------------------------------------------------------

def _flash_attn_kernel(q_ref, k_ref, v_ref, o_ref, m_ref, l_ref, acc_ref,
                       *, inv_scale, tq, tk):
    qi = pl.program_id(1)
    ki = pl.program_id(2)

    @pl.when(ki == 0)
    def _():
        m_ref[...] = jnp.full_like(m_ref, -jnp.inf)
        l_ref[...] = jnp.zeros_like(l_ref)
        acc_ref[...] = jnp.zeros_like(acc_ref)

    q_start = qi * tq
    kv_start = ki * tk

    # Causal block skipping: kv tiles strictly above the diagonal contribute nothing.
    @pl.when(kv_start <= q_start + tq - 1)
    def _():
        # Fold 1/scale into q (O(H*tq*D) VPU) instead of dividing the (tq, tk) scores.
        q = q_ref[0] * inv_scale          # (H, tq, D)
        k = k_ref[0]                      # (H, tk, D)
        v = v_ref[0]                      # (H, tk, D)

        # scores: (H, tq, tk), f32 accumulation on the MXU (bf16 operands stay bf16).
        s = jnp.einsum("hqd,hkd->hqk", q, k, preferred_element_type=jnp.float32)

        # Causal mask inside the (possibly diagonal) tile.
        row = q_start + jax.lax.broadcasted_iota(jnp.int32, (1, tq, tk), 1)
        col = kv_start + jax.lax.broadcasted_iota(jnp.int32, (1, tq, tk), 2)
        s = jnp.where(col <= row, s, jnp.finfo(jnp.float32).min)

        # Online softmax update (f32 statistics, like the reference's fp32 softmax).
        m_prev = m_ref[...]                                       # (H, tq, 1)
        m_new = jnp.maximum(m_prev, s.max(axis=-1, keepdims=True))
        alpha = jnp.exp(m_prev - m_new)
        p = jnp.exp(s - m_new)
        l_ref[...] = alpha * l_ref[...] + p.sum(axis=-1, keepdims=True)
        acc_ref[...] = alpha * acc_ref[...] + jnp.einsum(
            "hqk,hkd->hqd", p.astype(v.dtype), v,
            preferred_element_type=jnp.float32)
        m_ref[...] = m_new

    @pl.when(ki == pl.num_programs(2) - 1)
    def _():
        inv_l = pl.reciprocal(l_ref[...], approx=True)            # EUP slot
        out = acc_ref[...] * inv_l                                 # (H, tq, D)
        H, _, D = out.shape
        # Merge heads in-kernel into a lane-dense (tq, H*D) slab.  At production
        # D=128 each per-head store is a lane-aligned full-width vst.
        for h in range(H):
            o_ref[0, :, h * D:(h + 1) * D] = out[h].astype(o_ref.dtype)


def flash_attention_pallas(q, k, v, *, scale, tq_pref=128, tk_pref=128):
    """q, k, v: (B, H, S, D) -> (B, S, H*D) causal attention output (heads merged)."""
    B, H, S, D = q.shape
    tq = _pick_tile(S, tq_pref)
    tk = _pick_tile(S, tk_pref)
    grid = (B, S // tq, S // tk)
    kernel = functools.partial(_flash_attn_kernel,
                               inv_scale=1.0 / scale, tq=tq, tk=tk)
    q_spec = pl.BlockSpec((1, H, tq, D), lambda b, qi, ki: (b, 0, qi, 0))
    kv_spec = pl.BlockSpec((1, H, tk, D), lambda b, qi, ki: (b, 0, ki, 0))
    itemsize = q.dtype.itemsize
    cost = pl.CostEstimate(
        flops=2 * 2 * B * H * S * S * D,          # QK^T + PV
        transcendentals=B * H * S * S,             # exp
        bytes_accessed=4 * B * H * S * D * itemsize,
    )
    return pl.pallas_call(
        kernel,
        out_shape=jax.ShapeDtypeStruct((B, S, H * D), q.dtype),
        grid=grid,
        in_specs=[q_spec, kv_spec, kv_spec],
        out_specs=pl.BlockSpec((1, tq, H * D), lambda b, qi, ki: (b, qi, 0)),
        scratch_shapes=[
            pltpu.VMEM((H, tq, 1), jnp.float32),   # m (running max)
            pltpu.VMEM((H, tq, 1), jnp.float32),   # l (running sum)
            pltpu.VMEM((H, tq, D), jnp.float32),   # acc
        ],
        compiler_params=pltpu.CompilerParams(
            dimension_semantics=("parallel", "parallel", "arbitrary"),
            vmem_limit_bytes=32 * 1024 * 1024,
        ),
        cost_estimate=cost,
    )(q, k, v)


# ----------------------------------------------------------------------------
# Rotary embedding helpers (GPT-J / CodeGen style, matches the reference)
# ----------------------------------------------------------------------------

def create_sinusoidal_positions(num_pos, dim):
    inv_freq = 1.0 / (10000.0 ** (jnp.arange(0, dim, 2, dtype=jnp.float32) / dim))
    sinusoid_inp = jnp.einsum(
        "i,j->ij", jnp.arange(num_pos, dtype=jnp.float32), inv_freq)
    return jnp.concatenate([jnp.sin(sinusoid_inp), jnp.cos(sinusoid_inp)], axis=-1)


def _rotate_every_two(x):
    x1 = x[..., ::2]
    x2 = x[..., 1::2]
    x = jnp.stack((-x2, x1), axis=-1)
    return x.reshape(x.shape[:-2] + (-1,))


def _apply_rotary_pos_emb(t, sin, cos):
    # t: (B, S, H, rotary_dim); sin/cos: (B, S, rotary_dim // 2)
    sin = jnp.repeat(sin[:, :, None, :], 2, axis=3)
    cos = jnp.repeat(cos[:, :, None, :], 2, axis=3)
    return (t * cos) + (_rotate_every_two(t) * sin)


# ----------------------------------------------------------------------------
# MossAttention forward (eval mode, no layer_past / attention_mask / head_mask)
# ----------------------------------------------------------------------------

def moss_attention_forward(
    hidden_states,      # (B, S, E)
    position_ids,       # (B, S) int32
    w_qkv,              # (3E, E)  torch Linear weight layout (out, in)
    w_out,              # (E, E)
    embed_positions,    # (n_positions, rotary_dim) precomputed sin||cos table
    *,
    n_head,
    rotary_dim,
):
    B, S, E = hidden_states.shape
    head_dim = E // n_head
    mp_num = 4

    # qkv projection (tiled Pallas matmul, torch Linear: y = x @ W^T, no HBM transpose)
    x_flat = hidden_states.reshape(B * S, E)
    qkv = linear_pallas(x_flat, w_qkv).reshape(B, S, 3 * E)

    # split as in the reference: (B, S, mp_num, 3*local_dim) -> (query, value, key)
    qkv_split = qkv.reshape(B, S, mp_num, -1)
    local_dim = head_dim * n_head // mp_num
    query = qkv_split[..., :local_dim]
    value = qkv_split[..., local_dim:2 * local_dim]
    key = qkv_split[..., 2 * local_dim:]

    def split_heads(x):
        x = x.reshape(B, S, mp_num, n_head // mp_num, head_dim)
        return x.reshape(B, S, n_head, head_dim)

    query = split_heads(query)
    key = split_heads(key)
    value = split_heads(value)

    # rotary position embedding on the first `rotary_dim` of head_dim
    # TODO(synk): could fuse rotary application into the attention kernel's q/k load
    # path (pltpu.roll) to save one HBM round-trip of q and k; left as XLA glue here.
    sincos = embed_positions[position_ids]                 # (B, S, rotary_dim)
    sin, cos = jnp.split(sincos, 2, axis=-1)
    k_rot = _apply_rotary_pos_emb(key[..., :rotary_dim], sin, cos)
    q_rot = _apply_rotary_pos_emb(query[..., :rotary_dim], sin, cos)
    key = jnp.concatenate([k_rot, key[..., rotary_dim:]], axis=-1)
    query = jnp.concatenate([q_rot, query[..., rotary_dim:]], axis=-1)

    # (B, S, H, D) -> (B, H, S, D)
    q = jnp.transpose(query, (0, 2, 1, 3))
    k = jnp.transpose(key, (0, 2, 1, 3))
    v = jnp.transpose(value, (0, 2, 1, 3))

    # flash-style causal attention; output comes back heads-merged as (B, S, E)
    scale = math.sqrt(head_dim)
    attn = flash_attention_pallas(q, k, v, scale=scale)

    # output projection (tiled Pallas matmul)
    out = linear_pallas(attn.reshape(B * S, E), w_out).reshape(B, S, E)

    # attn_dropout / resid_dropout are identity in eval mode; use_cache=False => no present.
    return out


# ----------------------------------------------------------------------------
# Main
# ----------------------------------------------------------------------------

if __name__ == "__main__":
    # Small config consistent with the module:
    B, S = 2, 8
    n_embd = 32
    n_head = 4            # head_dim = 8; n_head divisible by mp_num=4
    rotary_dim = 8        # <= head_dim, even
    n_positions = 16

    key = jax.random.PRNGKey(0)
    k_x, k_qkv, k_out = jax.random.split(key, 3)

    hidden_states = jax.random.normal(k_x, (B, S, n_embd), dtype=jnp.float32)
    position_ids = jnp.broadcast_to(jnp.arange(S, dtype=jnp.int32), (B, S))

    # Deterministic parameter init (torch Linear weight layout: (out_features, in_features))
    w_qkv = 0.02 * jax.random.normal(k_qkv, (3 * n_embd, n_embd), dtype=jnp.float32)
    w_out = 0.02 * jax.random.normal(k_out, (n_embd, n_embd), dtype=jnp.float32)

    # sin/cos table precomputed once per model (hoisted out of the forward pass)
    embed_positions = create_sinusoidal_positions(n_positions, rotary_dim)

    fwd = jax.jit(functools.partial(
        moss_attention_forward, n_head=n_head, rotary_dim=rotary_dim))
    out = fwd(hidden_states, position_ids, w_qkv, w_out, embed_positions)
    jax.block_until_ready(out)
    assert out.shape == (B, S, n_embd), out.shape
    print("KERNEL_OK")
</pallas_src>

<mosaic_0001>
module attributes {stable_mosaic.version = 11 : i64} {
  func.func @_linear_kernel(%arg0: i32, %arg1: i32, %arg2: i32, %arg3: memref<16x32xf32, #tpu.memory_space<vmem>>, %arg4: memref<96x32xf32, #tpu.memory_space<vmem>>, %arg5: memref<16x96xf32, #tpu.memory_space<vmem>>, %arg6: memref<16x96xf32, #tpu.memory_space<vmem>>) attributes {dimension_semantics = [#tpu.dimension_semantics<parallel>, #tpu.dimension_semantics<parallel>, #tpu.dimension_semantics<arbitrary>], iteration_bounds = array<i64: 1, 1, 1>, scalar_prefetch = 0 : i64, scratch_operands = 1 : i64, tpu.core_type = #tpu.core_type<tc>, window_params = [{transform_indices = @transform_0, window_bounds = array<i64: 16, 32>}, {transform_indices = @transform_1, window_bounds = array<i64: 96, 32>}, {transform_indices = @transform_2, window_bounds = array<i64: 16, 96>}]} {
    %c0_i32 = arith.constant 0 : i32
    %0 = arith.cmpi eq, %arg2, %c0_i32 : i32
    %1 = arith.extui %0 : i1 to i32
    %c0_i32_0 = arith.constant 0 : i32
    %2 = arith.cmpi ne, %1, %c0_i32_0 : i32
    scf.if %2 {
      %cst_10 = arith.constant 0.000000e+00 : f32
      %12 = vector.broadcast %cst_10 : f32 to vector<16x96xf32>
      %c0_11 = arith.constant 0 : index
      %c0_12 = arith.constant 0 : index
      %13 = vector.load %arg6[%c0_11, %c0_12] : memref<16x96xf32, #tpu.memory_space<vmem>>, vector<16x96xf32>
      tpu.vector_store %arg6[%c0_11, %c0_12], %12 {strides = array<i32>} : memref<16x96xf32, #tpu.memory_space<vmem>>, vector<16x96xf32>,
    } else {
    }
    %c0 = arith.constant 0 : index
    %c0_1 = arith.constant 0 : index
    %3 = vector.load %arg6[%c0, %c0_1] : memref<16x96xf32, #tpu.memory_space<vmem>>, vector<16x96xf32>
    %c0_2 = arith.constant 0 : index
    %c0_3 = arith.constant 0 : index
    %4 = vector.load %arg3[%c0_2, %c0_3] : memref<16x32xf32, #tpu.memory_space<vmem>>, vector<16x32xf32>
    %c0_4 = arith.constant 0 : index
    %c0_5 = arith.constant 0 : index
    %5 = vector.load %arg4[%c0_4, %c0_5] : memref<96x32xf32, #tpu.memory_space<vmem>>, vector<96x32xf32>
    %cst = arith.constant dense<0.000000e+00> : vector<16x96xf32>
    %6 = tpu.matmul %4, %5, %cst {dimension_numbers = #tpu.dot_dimension_numbers<[1], [1], [0], [0], [0, 0, 1, 0], [], []>} : vector<16x32xf32>, vector<96x32xf32>, vector<16x96xf32> -> vector<16x96xf32>
    %7 = arith.addf %3, %6 : vector<16x96xf32>
    %c0_6 = arith.constant 0 : index
    %c0_7 = arith.constant 0 : index
    %8 = vector.load %arg6[%c0_6, %c0_7] : memref<16x96xf32, #tpu.memory_space<vmem>>, vector<16x96xf32>
    tpu.vector_store %arg6[%c0_6, %c0_7], %7 {strides = array<i32>} : memref<16x96xf32, #tpu.memory_space<vmem>>, vector<16x96xf32>,
    %c0_i32_8 = arith.constant 0 : i32
    %9 = arith.cmpi eq, %arg2, %c0_i32_8 : i32
    %10 = arith.extui %9 : i1 to i32
    %c0_i32_9 = arith.constant 0 : i32
    %11 = arith.cmpi ne, %10, %c0_i32_9 : i32
    scf.if %11 {
      %c0_10 = arith.constant 0 : index
      %c0_11 = arith.constant 0 : index
      %12 = vector.load %arg6[%c0_10, %c0_11] : memref<16x96xf32, #tpu.memory_space<vmem>>, vector<16x96xf32>
      %c0_12 = arith.constant 0 : index
      %c0_13 = arith.constant 0 : index
      %13 = vector.load %arg5[%c0_12, %c0_13] : memref<16x96xf32, #tpu.memory_space<vmem>>, vector<16x96xf32>
      tpu.vector_store %arg5[%c0_12, %c0_13], %12 {strides = array<i32>} : memref<16x96xf32, #tpu.memory_space<vmem>>, vector<16x96xf32>,
    } else {
    }
    return
  }
  func.func @transform_0(%arg0: i32, %arg1: i32, %arg2: i32) -> (i32, i32) {
    %c0_i32 = arith.constant 0 : i32
    return %arg0, %arg2 : i32, i32
  }
  func.func @transform_1(%arg0: i32, %arg1: i32, %arg2: i32) -> (i32, i32) {
    %c0_i32 = arith.constant 0 : i32
    return %arg1, %arg2 : i32, i32
  }
  func.func @transform_2(%arg0: i32, %arg1: i32, %arg2: i32) -> (i32, i32) {
    %c0_i32 = arith.constant 0 : i32
    return %arg0, %arg1 : i32, i32
  }
}

module attributes {stable_mosaic.version = 11 : i64} {
  func.func @_linear_kernel(%arg0: i32, %arg1: i32, %arg2: i32, %arg3: memref<16x32xf32, #tpu.memory_space<vmem>>, %arg4: memref<32x32xf32, #tpu.memory_space<vmem>>, %arg5: memref<16x32xf32, #tpu.memory_space<vmem>>, %arg6: memref<16x32xf32, #tpu.memory_space<vmem>>) attributes {dimension_semantics = [#tpu.dimension_semantics<parallel>, #tpu.dimension_semantics<parallel>, #tpu.dimension_semantics<arbitrary>], iteration_bounds = array<i64: 1, 1, 1>, scalar_prefetch = 0 : i64, scratch_operands = 1 : i64, tpu.core_type = #tpu.core_type<tc>, window_params = [{transform_indices = @transform_0, window_bounds = array<i64: 16, 32>}, {transform_indices = @transform_1, window_bounds = array<i64: 32, 32>}, {transform_indices = @transform_2, window_bounds = array<i64: 16, 32>}]} {
    %c0_i32 = arith.constant 0 : i32
    %0 = arith.cmpi eq, %arg2, %c0_i32 : i32
    %1 = arith.extui %0 : i1 to i32
    %c0_i32_0 = arith.constant 0 : i32
    %2 = arith.cmpi ne, %1, %c0_i32_0 : i32
    scf.if %2 {
      %cst_10 = arith.constant 0.000000e+00 : f32
      %12 = vector.broadcast %cst_10 : f32 to vector<16x32xf32>
      %c0_11 = arith.constant 0 : index
      %c0_12 = arith.constant 0 : index
      %13 = vector.load %arg6[%c0_11, %c0_12] : memref<16x32xf32, #tpu.memory_space<vmem>>, vector<16x32xf32>
      tpu.vector_store %arg6[%c0_11, %c0_12], %12 {strides = array<i32>} : memref<16x32xf32, #tpu.memory_space<vmem>>, vector<16x32xf32>,
    } else {
    }
    %c0 = arith.constant 0 : index
    %c0_1 = arith.constant 0 : index
    %3 = vector.load %arg6[%c0, %c0_1] : memref<16x32xf32, #tpu.memory_space<vmem>>, vector<16x32xf32>
    %c0_2 = arith.constant 0 : index
    %c0_3 = arith.constant 0 : index
    %4 = vector.load %arg3[%c0_2, %c0_3] : memref<16x32xf32, #tpu.memory_space<vmem>>, vector<16x32xf32>
    %c0_4 = arith.constant 0 : index
    %c0_5 = arith.constant 0 : index
    %5 = vector.load %arg4[%c0_4, %c0_5] : memref<32x32xf32, #tpu.memory_space<vmem>>, vector<32x32xf32>
    %cst = arith.constant dense<0.000000e+00> : vector<16x32xf32>
    %6 = tpu.matmul %4, %5, %cst {dimension_numbers = #tpu.dot_dimension_numbers<[1], [1], [0], [0], [0, 0, 1, 0], [], []>} : vector<16x32xf32>, vector<32x32xf32>, vector<16x32xf32> -> vector<16x32xf32>
    %7 = arith.addf %3, %6 : vector<16x32xf32>
    %c0_6 = arith.constant 0 : index
    %c0_7 = arith.constant 0 : index
    %8 = vector.load %arg6[%c0_6, %c0_7] : memref<16x32xf32, #tpu.memory_space<vmem>>, vector<16x32xf32>
    tpu.vector_store %arg6[%c0_6, %c0_7], %7 {strides = array<i32>} : memref<16x32xf32, #tpu.memory_space<vmem>>, vector<16x32xf32>,
    %c0_i32_8 = arith.constant 0 : i32
    %9 = arith.cmpi eq, %arg2, %c0_i32_8 : i32
    %10 = arith.extui %9 : i1 to i32
    %c0_i32_9 = arith.constant 0 : i32
    %11 = arith.cmpi ne, %10, %c0_i32_9 : i32
    scf.if %11 {
      %c0_10 = arith.constant 0 : index
      %c0_11 = arith.constant 0 : index
      %12 = vector.load %arg6[%c0_10, %c0_11] : memref<16x32xf32, #tpu.memory_space<vmem>>, vector<16x32xf32>
      %c0_12 = arith.constant 0 : index
      %c0_13 = arith.constant 0 : index
      %13 = vector.load %arg5[%c0_12, %c0_13] : memref<16x32xf32, #tpu.memory_space<vmem>>, vector<16x32xf32>
      tpu.vector_store %arg5[%c0_12, %c0_13], %12 {strides = array<i32>} : memref<16x32xf32, #tpu.memory_space<vmem>>, vector<16x32xf32>,
    } else {
    }
    return
  }
  func.func @transform_0(%arg0: i32, %arg1: i32, %arg2: i32) -> (i32, i32) {
    %c0_i32 = arith.constant 0 : i32
    return %arg0, %arg2 : i32, i32
  }
  func.func @transform_1(%arg0: i32, %arg1: i32, %arg2: i32) -> (i32, i32) {
    %c0_i32 = arith.constant 0 : i32
    return %arg1, %arg2 : i32, i32
  }
  func.func @transform_2(%arg0: i32, %arg1: i32, %arg2: i32) -> (i32, i32) {
    %c0_i32 = arith.constant 0 : i32
    return %arg0, %arg1 : i32, i32
  }
}

module attributes {stable_mosaic.version = 11 : i64} {
  func.func @_flash_attn_kernel(%arg0: i32, %arg1: i32, %arg2: i32, %arg3: memref<1x4x8x8xf32, #tpu.memory_space<vmem>>, %arg4: memref<1x4x8x8xf32, #tpu.memory_space<vmem>>, %arg5: memref<1x4x8x8xf32, #tpu.memory_space<vmem>>, %arg6: memref<1x8x32xf32, #tpu.memory_space<vmem>>, %arg7: memref<4x8x1xf32, #tpu.memory_space<vmem>>, %arg8: memref<4x8x1xf32, #tpu.memory_space<vmem>>, %arg9: memref<4x8x8xf32, #tpu.memory_space<vmem>>) attributes {dimension_semantics = [#tpu.dimension_semantics<parallel>, #tpu.dimension_semantics<parallel>, #tpu.dimension_semantics<arbitrary>], iteration_bounds = array<i64: 2, 1, 1>, scalar_prefetch = 0 : i64, scratch_operands = 3 : i64, tpu.core_type = #tpu.core_type<tc>, window_params = [{transform_indices = @transform_0, window_bounds = array<i64: 1, 4, 8, 8>}, {transform_indices = @transform_1, window_bounds = array<i64: 1, 4, 8, 8>}, {transform_indices = @transform_2, window_bounds = array<i64: 1, 4, 8, 8>}, {transform_indices = @transform_3, window_bounds = array<i64: 1, 8, 32>}]} {
    %c0_i32 = arith.constant 0 : i32
    %0 = arith.cmpi eq, %arg2, %c0_i32 : i32
    %1 = arith.extui %0 : i1 to i32
    %c0_i32_0 = arith.constant 0 : i32
    %2 = arith.cmpi ne, %1, %c0_i32_0 : i32
    scf.if %2 {
      %cst = arith.constant 0xFF800000 : f32
      %13 = vector.broadcast %cst : f32 to vector<4x8x1xf32>
      %c0 = arith.constant 0 : index
      %c0_6 = arith.constant 0 : index
      %c0_7 = arith.constant 0 : index
      %14 = vector.load %arg7[%c0, %c0_6, %c0_7] : memref<4x8x1xf32, #tpu.memory_space<vmem>>, vector<4x8x1xf32>
      tpu.vector_store %arg7[%c0, %c0_6, %c0_7], %13 {strides = array<i32>} : memref<4x8x1xf32, #tpu.memory_space<vmem>>, vector<4x8x1xf32>,
      %cst_8 = arith.constant 0.000000e+00 : f32
      %15 = vector.broadcast %cst_8 : f32 to vector<4x8x1xf32>
      %c0_9 = arith.constant 0 : index
      %c0_10 = arith.constant 0 : index
      %c0_11 = arith.constant 0 : index
      %16 = vector.load %arg8[%c0_9, %c0_10, %c0_11] : memref<4x8x1xf32, #tpu.memory_space<vmem>>, vector<4x8x1xf32>
      tpu.vector_store %arg8[%c0_9, %c0_10, %c0_11], %15 {strides = array<i32>} : memref<4x8x1xf32, #tpu.memory_space<vmem>>, vector<4x8x1xf32>,
      %cst_12 = arith.constant 0.000000e+00 : f32
      %17 = vector.broadcast %cst_12 : f32 to vector<4x8x8xf32>
      %c0_13 = arith.constant 0 : index
      %c0_14 = arith.constant 0 : index
      %c0_15 = arith.constant 0 : index
      %18 = vector.load %arg9[%c0_13, %c0_14, %c0_15] : memref<4x8x8xf32, #tpu.memory_space<vmem>>, vector<4x8x8xf32>
      tpu.vector_store %arg9[%c0_13, %c0_14, %c0_15], %17 {strides = array<i32>} : memref<4x8x8xf32, #tpu.memory_space<vmem>>, vector<4x8x8xf32>,
    } else {
    }
    %c8_i32 = arith.constant 8 : i32
    %3 = arith.muli %arg1, %c8_i32 : i32
    %c8_i32_1 = arith.constant 8 : i32
    %4 = arith.muli %arg2, %c8_i32_1 : i32
    %c8_i32_2 = arith.constant 8 : i32
    %5 = arith.addi %3, %c8_i32_2 : i32
    %c1_i32 = arith.constant 1 : i32
    %6 = arith.subi %5, %c1_i32 : i32
    %7 = arith.cmpi sle, %4, %6 : i32
    %8 = arith.extui %7 : i1 to i32
    %c0_i32_3 = arith.constant 0 : i32
    %9 = arith.cmpi ne, %8, %c0_i32_3 : i32
    scf.if %9 {
      %c0 = arith.constant 0 : index
      %c0_6 = arith.constant 0 : index
      %c0_7 = arith.constant 0 : index
      %c0_8 = arith.constant 0 : index
      %13 = vector.load %arg3[%c0, %c0_6, %c0_7, %c0_8] : memref<1x4x8x8xf32, #tpu.memory_space<vmem>>, vector<1x4x8x8xf32>
      %14 = vector.shape_cast %13 : vector<1x4x8x8xf32> to vector<4x8x8xf32>
      %cst = arith.constant 0.353553385 : f32
      %15 = vector.broadcast %cst : f32 to vector<4x8x8xf32>
      %16 = arith.mulf %14, %15 : vector<4x8x8xf32>
      %c0_9 = arith.constant 0 : index
      %c0_10 = arith.constant 0 : index
      %c0_11 = arith.constant 0 : index
      %c0_12 = arith.constant 0 : index
      %17 = vector.load %arg4[%c0_9, %c0_10, %c0_11, %c0_12] : memref<1x4x8x8xf32, #tpu.memory_space<vmem>>, vector<1x4x8x8xf32>
      %18 = vector.shape_cast %17 : vector<1x4x8x8xf32> to vector<4x8x8xf32>
      %c0_13 = arith.constant 0 : index
      %c0_14 = arith.constant 0 : index
      %c0_15 = arith.constant 0 : index
      %c0_16 = arith.constant 0 : index
      %19 = vector.load %arg5[%c0_13, %c0_14, %c0_15, %c0_16] : memref<1x4x8x8xf32, #tpu.memory_space<vmem>>, vector<1x4x8x8xf32>
      %20 = vector.shape_cast %19 : vector<1x4x8x8xf32> to vector<4x8x8xf32>
      "tpu.trace_start"() <{level = 10 : i32, message = "hqd,hkd->hqk"}> : () -> ()
      %cst_17 = arith.constant dense<0.000000e+00> : vector<4x8x8xf32>
      %21 = tpu.matmul %16, %18, %cst_17 {dimension_numbers = #tpu.dot_dimension_numbers<[2], [2], [1], [1], [0, 0, 0, 1, 1, 1], [0], [0]>} : vector<4x8x8xf32>, vector<4x8x8xf32>, vector<4x8x8xf32> -> vector<4x8x8xf32>
      "tpu.trace_stop"() : () -> ()
      %22 = tpu.iota {dimensions = array<i32: 1>} : vector<1x8x8xi32>
      %23 = vector.broadcast %3 : i32 to vector<1x8x8xi32>
      %24 = arith.addi %23, %22 : vector<1x8x8xi32>
      %25 = tpu.iota {dimensions = array<i32: 2>} : vector<1x8x8xi32>
      %26 = vector.broadcast %4 : i32 to vector<1x8x8xi32>
      %27 = arith.addi %26, %25 : vector<1x8x8xi32>
      %28 = arith.cmpi sle, %27, %24 : vector<1x8x8xi32>
      %cst_18 = arith.constant -3.40282347E+38 : f32
      %29 = vector.shape_cast %28 : vector<1x8x8xi1> to vector<1x8x8xi1>
      %30 = vector.broadcast %29 : vector<1x8x8xi1> to vector<4x8x8xi1>
      %31 = vector.broadcast %cst_18 : f32 to vector<4x8x8xf32>
      %32 = arith.select %30, %21, %31 : vector<4x8x8xi1>, vector<4x8x8xf32>
      %c0_19 = arith.constant 0 : index
      %c0_20 = arith.constant 0 : index
      %c0_21 = arith.constant 0 : index
      %33 = vector.load %arg7[%c0_19, %c0_20, %c0_21] : memref<4x8x1xf32, #tpu.memory_space<vmem>>, vector<4x8x1xf32>
      %cst_22 = arith.constant dense<0xFF800000> : vector<4x8xf32>
      %34 = vector.multi_reduction <maximumf>, %32, %cst_22 [2] : vector<4x8x8xf32> to vector<4x8xf32>
      %35 = vector.shape_cast %34 : vector<4x8xf32> to vector<4x8x1xf32>
      %36 = arith.maximumf %33, %35 : vector<4x8x1xf32>
      %37 = arith.subf %33, %36 : vector<4x8x1xf32>
      %38 = math.exp %37 : vector<4x8x1xf32>
      %39 = vector.broadcast %36 : vector<4x8x1xf32> to vector<4x8x8xf32>
      %40 = arith.subf %32, %39 : vector<4x8x8xf32>
      %41 = math.exp %40 : vector<4x8x8xf32>
      %c0_23 = arith.constant 0 : index
      %c0_24 = arith.constant 0 : index
      %c0_25 = arith.constant 0 : index
      %42 = vector.load %arg8[%c0_23, %c0_24, %c0_25] : memref<4x8x1xf32, #tpu.memory_space<vmem>>, vector<4x8x1xf32>
      %43 = arith.mulf %38, %42 : vector<4x8x1xf32>
      %cst_26 = arith.constant dense<0.000000e+00> : vector<4x8xf32>
      %44 = vector.multi_reduction <add>, %41, %cst_26 [2] : vector<4x8x8xf32> to vector<4x8xf32>
      %45 = vector.shape_cast %44 : vector<4x8xf32> to vector<4x8x1xf32>
      %46 = arith.addf %43, %45 : vector<4x8x1xf32>
      %c0_27 = arith.constant 0 : index
      %c0_28 = arith.constant 0 : index
      %c0_29 = arith.constant 0 : index
      %47 = vector.load %arg8[%c0_27, %c0_28, %c0_29] : memref<4x8x1xf32, #tpu.memory_space<vmem>>, vector<4x8x1xf32>
      tpu.vector_store %arg8[%c0_27, %c0_28, %c0_29], %46 {strides = array<i32>} : memref<4x8x1xf32, #tpu.memory_space<vmem>>, vector<4x8x1xf32>,
      %c0_30 = arith.constant 0 : index
      %c0_31 = arith.constant 0 : index
      %c0_32 = arith.constant 0 : index
      %48 = vector.load %arg9[%c0_30, %c0_31, %c0_32] : memref<4x8x8xf32, #tpu.memory_space<vmem>>, vector<4x8x8xf32>
      %49 = vector.broadcast %38 : vector<4x8x1xf32> to vector<4x8x8xf32>
      %50 = arith.mulf %49, %48 : vector<4x8x8xf32>
      "tpu.trace_start"() <{level = 10 : i32, message = "hqk,hkd->hqd"}> : () -> ()
      %cst_33 = arith.constant dense<0.000000e+00> : vector<4x8x8xf32>
      %51 = tpu.matmul %41, %20, %cst_33 {dimension_numbers = #tpu.dot_dimension_numbers<[2], [1], [1], [2], [0, 0, 0, 1, 1, 2], [0], [0]>} : vector<4x8x8xf32>, vector<4x8x8xf32>, vector<4x8x8xf32> -> vector<4x8x8xf32>
      "tpu.trace_stop"() : () -> ()
      %52 = arith.addf %50, %51 : vector<4x8x8xf32>
      %c0_34 = arith.constant 0 : index
      %c0_35 = arith.constant 0 : index
      %c0_36 = arith.constant 0 : index
      %53 = vector.load %arg9[%c0_34, %c0_35, %c0_36] : memref<4x8x8xf32, #tpu.memory_space<vmem>>, vector<4x8x8xf32>
      tpu.vector_store %arg9[%c0_34, %c0_35, %c0_36], %52 {strides = array<i32>} : memref<4x8x8xf32, #tpu.memory_space<vmem>>, vector<4x8x8xf32>,
      %c0_37 = arith.constant 0 : index
      %c0_38 = arith.constant 0 : index
      %c0_39 = arith.constant 0 : index
      %54 = vector.load %arg7[%c0_37, %c0_38, %c0_39] : memref<4x8x1xf32, #tpu.memory_space<vmem>>, vector<4x8x1xf32>
      tpu.vector_store %arg7[%c0_37, %c0_38, %c0_39], %36 {strides = array<i32>} : memref<4x8x1xf32, #tpu.memory_space<vmem>>, vector<4x8x1xf32>,
    } else {
    }
    %c0_i32_4 = arith.constant 0 : i32
    %10 = arith.cmpi eq, %arg2, %c0_i32_4 : i32
    %11 = arith.extui %10 : i1 to i32
    %c0_i32_5 = arith.constant 0 : i32
    %12 = arith.cmpi ne, %11, %c0_i32_5 : i32
    scf.if %12 {
      %c0 = arith.constant 0 : index
      %c0_6 = arith.constant 0 : index
      %c0_7 = arith.constant 0 : index
      %13 = vector.load %arg8[%c0, %c0_6, %c0_7] : memref<4x8x1xf32, #tpu.memory_space<vmem>>, vector<4x8x1xf32>
      %14 = tpu.reciprocal %13 {approx = true} : vector<4x8x1xf32> -> vector<4x8x1xf32>
      %c0_8 = arith.constant 0 : index
      %c0_9 = arith.constant 0 : index
      %c0_10 = arith.constant 0 : index
      %15 = vector.load %arg9[%c0_8, %c0_9, %c0_10] : memref<4x8x8xf32, #tpu.memory_space<vmem>>, vector<4x8x8xf32>
      %16 = vector.broadcast %14 : vector<4x8x1xf32> to vector<4x8x8xf32>
      %17 = arith.mulf %15, %16 : vector<4x8x8xf32>
      %18 = vector.extract_strided_slice %17 {offsets = [0, 0, 0], sizes = [1, 8, 8], strides = [1, 1, 1]} : vector<4x8x8xf32> to vector<1x8x8xf32>
      %19 = vector.shape_cast %18 : vector<1x8x8xf32> to vector<8x8xf32>
      %c0_11 = arith.constant 0 : index
      %c0_12 = arith.constant 0 : index
      %c0_13 = arith.constant 0 : index
      %20 = vector.load %arg6[%c0_11, %c0_12, %c0_13] : memref<1x8x32xf32, #tpu.memory_space<vmem>>, vector<1x8x8xf32>
      %21 = vector.shape_cast %20 : vector<1x8x8xf32> to vector<8x8xf32>
      %22 = vector.shape_cast %19 : vector<8x8xf32> to vector<1x8x8xf32>
      tpu.vector_store %arg6[%c0_11, %c0_12, %c0_13], %22 {strides = array<i32>} : memref<1x8x32xf32, #tpu.memory_space<vmem>>, vector<1x8x8xf32>,
      %23 = vector.extract_strided_slice %17 {offsets = [1, 0, 0], sizes = [1, 8, 8], strides = [1, 1, 1]} : vector<4x8x8xf32> to vector<1x8x8xf32>
      %24 = vector.shape_cast %23 : vector<1x8x8xf32> to vector<8x8xf32>
      %c0_14 = arith.constant 0 : index
      %c0_15 = arith.constant 0 : index
      %c8 = arith.constant 8 : index
      %25 = vector.load %arg6[%c0_14, %c0_15, %c8] : memref<1x8x32xf32, #tpu.memory_space<vmem>>, vector<1x8x8xf32>
      %26 = vector.shape_cast %25 : vector<1x8x8xf32> to vector<8x8xf32>
      %27 = vector.shape_cast %24 : vector<8x8xf32> to vector<1x8x8xf32>
      tpu.vector_store %arg6[%c0_14, %c0_15, %c8], %27 {strides = array<i32>} : memref<1x8x32xf32, #tpu.memory_space<vmem>>, vector<1x8x8xf32>,
      %28 = vector.extract_strided_slice %17 {offsets = [2, 0, 0], sizes = [1, 8, 8], strides = [1, 1, 1]} : vector<4x8x8xf32> to vector<1x8x8xf32>
      %29 = vector.shape_cast %28 : vector<1x8x8xf32> to vector<8x8xf32>
      %c0_16 = arith.constant 0 : index
      %c0_17 = arith.constant 0 : index
      %c16 = arith.constant 16 : index
      %30 = vector.load %arg6[%c0_16, %c0_17, %c16] : memref<1x8x32xf32, #tpu.memory_space<vmem>>, vector<1x8x8xf32>
      %31 = vector.shape_cast %30 : vector<1x8x8xf32> to vector<8x8xf32>
      %32 = vector.shape_cast %29 : vector<8x8xf32> to vector<1x8x8xf32>
      tpu.vector_store %arg6[%c0_16, %c0_17, %c16], %32 {strides = array<i32>} : memref<1x8x32xf32, #tpu.memory_space<vmem>>, vector<1x8x8xf32>,
      %33 = vector.extract_strided_slice %17 {offsets = [3, 0, 0], sizes = [1, 8, 8], strides = [1, 1, 1]} : vector<4x8x8xf32> to vector<1x8x8xf32>
      %34 = vector.shape_cast %33 : vector<1x8x8xf32> to vector<8x8xf32>
      %c0_18 = arith.constant 0 : index
      %c0_19 = arith.constant 0 : index
      %c24 = arith.constant 24 : index
      %35 = vector.load %arg6[%c0_18, %c0_19, %c24] : memref<1x8x32xf32, #tpu.memory_space<vmem>>, vector<1x8x8xf32>
      %36 = vector.shape_cast %35 : vector<1x8x8xf32> to vector<8x8xf32>
      %37 = vector.shape_cast %34 : vector<8x8xf32> to vector<1x8x8xf32>
      tpu.vector_store %arg6[%c0_18, %c0_19, %c24], %37 {strides = array<i32>} : memref<1x8x32xf32, #tpu.memory_space<vmem>>, vector<1x8x8xf32>,
    } else {
    }
    return
  }
  func.func @transform_0(%arg0: i32, %arg1: i32, %arg2: i32) -> (i32, i32, i32, i32) {
    %c0_i32 = arith.constant 0 : i32
    %c0_i32_0 = arith.constant 0 : i32
    %c0_i32_1 = arith.constant 0 : i32
    return %arg0, %c0_i32, %arg1, %c0_i32_0 : i32, i32, i32, i32
  }
  func.func @transform_1(%arg0: i32, %arg1: i32, %arg2: i32) -> (i32, i32, i32, i32) {
    %c0_i32 = arith.constant 0 : i32
    %c0_i32_0 = arith.constant 0 : i32
    %c0_i32_1 = arith.constant 0 : i32
    return %arg0, %c0_i32, %arg2, %c0_i32_0 : i32, i32, i32, i32
  }
  func.func @transform_2(%arg0: i32, %arg1: i32, %arg2: i32) -> (i32, i32, i32, i32) {
    %c0_i32 = arith.constant 0 : i32
    %c0_i32_0 = arith.constant 0 : i32
    %c0_i32_1 = arith.constant 0 : i32
    return %arg0, %c0_i32, %arg2, %c0_i32_0 : i32, i32, i32, i32
  }
  func.func @transform_3(%arg0: i32, %arg1: i32, %arg2: i32) -> (i32, i32, i32) {
    %c0_i32 = arith.constant 0 : i32
    %c0_i32_0 = arith.constant 0 : i32
    return %arg0, %arg1, %c0_i32 : i32, i32, i32
  }
}

</mosaic_0001>

<llo_original>
// kernel: moss_attention_forward.3
$region0: #{moss_attention_forward.3}
  #allocation0 [shape = 'u32[]', space=smem, size = 0x4, offset = 0x4, fixed_abs, tag = 'smem constant byte address 0x4 - core index']
  #allocation1 [shape = 'u32[144,128]{1,0:T(1,128)}', space=vmem, size = 0x12000, scoped, tag = 'internal scratch']
  #allocation2 [shape = 'f32[16,96]{1,0:T(8,128)}', space=vmem, size = 0x2000, scoped, tag = 'scratch operand']
  %s0 = inlined_call_operand.vmem [shape: f32[16,32], index: 0, kind: input, shape index: {}]
  %s1 = inlined_call_operand.vmem [shape: f32[96,32], index: 1, kind: input, shape index: {}]
  %s2 = inlined_call_operand.vmem [shape: f32[16,96], index: 2, kind: output, shape index: {}]
  %s3 = sld [smem:[#allocation0]]
  $region26: #{moss_attention_forward.3} parent=0
    _
  %s5 = ssub.s32 1, %s3
  %s6 = scalar_select 0, %s5, %s3
  // Predicated region
  $region2: #{moss_attention_forward.3} parent=0 // pred_check
    _
  $region3: #{moss_attention_forward.3} parent=0 // pred_check_branch
    %8 = sbr.rel (0) target = $region5
  $region4: #{moss_attention_forward.3} parent=0 // pred_region
    _
  $region5: #{moss_attention_forward.3} parent=0 // pred_fallthru
    _
  // Predicated region
  $region6: #{moss_attention_forward.3} parent=0 // pred_check
    _
  $region7: #{moss_attention_forward.3} parent=0 // pred_check_branch
    %10 = sbr.rel (0) target = $region9
  $region8: #{moss_attention_forward.3} parent=0 // pred_region
    _
  $region9: #{moss_attention_forward.3} parent=0 // pred_fallthru
    _
  %p11 = scmp.eq.s32.totalorder 0, 0
  // Predicated region
  $region10: #{moss_attention_forward.3} parent=0 // pred_check
    %p12 = pneg %p11
  $region11: #{moss_attention_forward.3} parent=0 // pred_check_branch
    %14 = sbr.rel (%p12) target = $region13
  $region12: #{moss_attention_forward.3} parent=0 // pred_region
    %vm15 = vcmask 785408
    %16 = vst.msk [vmem:[#allocation2] sm:$0xff] %vm15, 0.0
    %17 = vst.msk [vmem:[#allocation2 + $0x8] sm:$0xff] %vm15, 0.0
  $region13: #{moss_attention_forward.3} parent=0 // pred_fallthru
    _
  %v18 = vld [vmem:[#allocation2] sm:$0xff]
  %v19 = vld [vmem:[#allocation2 + $0x8] sm:$0xff]
  %v20 = vld [vmem:[%s0] sm:$0xff]
  %v21 = vld [vmem:[%s0 + $0x8] sm:$0xff]
  %v22 = vld [vmem:[%s1] sm:$0xff]
  %v23 = vld [vmem:[%s1 + $0x8] sm:$0xff]
  %v24 = vld [vmem:[%s1 + $0x10] sm:$0xff]
  %v25 = vld [vmem:[%s1 + $0x18] sm:$0xff]
  %v26 = vld [vmem:[%s1 + $0x20] sm:$0xff]
  %v27 = vld [vmem:[%s1 + $0x28] sm:$0xff]
  %v28 = vld [vmem:[%s1 + $0x30] sm:$0xff]
  %v29 = vld [vmem:[%s1 + $0x38] sm:$0xff]
  %v30 = vld [vmem:[%s1 + $0x40] sm:$0xff]
  %v31 = vld [vmem:[%s1 + $0x48] sm:$0xff]
  %v32 = vld [vmem:[%s1 + $0x50] sm:$0xff]
  %v33 = vld [vmem:[%s1 + $0x58] sm:$0xff]
  %vm34 = vcmask 261120
  %v36 = vsel %vm34, %v20, 0
  %v39 = vsel %vm34, %v21, 0
  %v42 = vsel %vm34, %v22, 0
  %v45 = vsel %vm34, %v23, 0
  %v48 = vsel %vm34, %v24, 0
  %v51 = vsel %vm34, %v25, 0
  %v54 = vsel %vm34, %v26, 0
  %v57 = vsel %vm34, %v27, 0
  %v60 = vsel %vm34, %v28, 0
  %v63 = vsel %vm34, %v29, 0
  %v66 = vsel %vm34, %v30, 0
  %v69 = vsel %vm34, %v31, 0
  %v72 = vsel %vm34, %v32, 0
  %v75 = vsel %vm34, %v33, 0
  %77 = vmatprep.subr.mxu0 0.0
  %78 = vmatpush1.xpose.msra.mxu0 0.0
  %79 = vmatprep.subr.mxu0 0.0
  %80 = vmatpush1.xpose.msra.mxu0 0.0
  %81 = vmatprep.subr.mxu0 0.0
  %82 = vmatpush1.xpose.msra.mxu0 0.0
  %83 = vmatprep.subr.mxu0 0.0
  %84 = vmatpush1.xpose.msra.mxu0 0.0
  %85 = vmatprep.subr.mxu0 0.0
  %86 = vmatpush1.xpose.msra.mxu0 %v75
  %87 = vmatprep.subr.mxu0 0.0
  %88 = vmatpush1.xpose.msra.mxu0 %v72
  %89 = vmatprep.subr.mxu0 0.0
  %90 = vmatpush1.xpose.msra.mxu0 %v69
  %91 = vmatprep.subr.mxu0 0.0
  %92 = vmatpush1.xpose.msra.mxu0 %v66
  %93 = vmatprep.subr.mxu0 0.0
  %94 = vmatpush1.xpose.msra.mxu0 %v63
  %95 = vmatprep.subr.mxu0 0.0
  %96 = vmatpush1.xpose.msra.mxu0 %v60
  %97 = vmatprep.subr.mxu0 0.0
  %98 = vmatpush1.xpose.msra.mxu0 %v57
  %99 = vmatprep.subr.mxu0 0.0
  %100 = vmatpush1.xpose.msra.mxu0 %v54
  %101 = vmatprep.subr.mxu0 0.0
  %102 = vmatpush1.xpose.msra.mxu0 %v51
  %103 = vmatprep.subr.mxu0 0.0
  %104 = vmatpush1.xpose.msra.mxu0 %v48
  %105 = vmatprep.subr.mxu0 0.0
  %106 = vmatpush1.xpose.msra.mxu0 %v45
  %107 = vmatprep.subr.mxu0 0.0
  %108 = vmatpush1.xpose.msra.mxu0 %v42
  %109 = vmatprep.subr.mxu0 0.0
  %110 = vmatpush2.xpose.msra.mxu0 0.0
  %111 = vmatprep.subr.mxu0 0.0
  %112 = vmatpush2.xpose.msra.mxu0 0.0
  %113 = vmatprep.subr.mxu0 0.0
  %114 = vmatpush2.xpose.msra.mxu0 0.0
  %115 = vmatprep.subr.mxu0 0.0
  %116 = vmatpush2.xpose.msra.mxu0 0.0
  %117 = vmatprep.subr.mxu0 0.0
  %118 = vmatpush2.xpose.msra.mxu0 0.0
  %119 = vmatprep.subr.mxu0 0.0
  %120 = vmatpush2.xpose.msra.mxu0 0.0
  %121 = vmatprep.subr.mxu0 0.0
  %122 = vmatpush2.xpose.msra.mxu0 0.0
  %123 = vmatprep.subr.mxu0 0.0
  %124 = vmatpush2.xpose.msra.mxu0 0.0
  %125 = vmatprep.subr.mxu0 0.0
  %126 = vmatpush2.xpose.msra.mxu0 0.0
  %127 = vmatprep.subr.mxu0 0.0
  %128 = vmatpush2.xpose.msra.mxu0 0.0
  %129 = vmatprep.subr.mxu0 0.0
  %130 = vmatpush2.xpose.msra.mxu0 0.0
  %131 = vmatprep.subr.mxu0 0.0
  %132 = vmatpush2.xpose.msra.mxu0 0.0
  %133 = vmatprep.subr.mxu0 0.0
  %134 = vmatpush2.xpose.msra.mxu0 0.0
  %135 = vmatprep.subr.mxu0 0.0
  %136 = vmatpush2.xpose.msra.mxu0 0.0
  %137 = vmatprep.subr.mxu0 0.0
  %138 = vmatpush2.xpose.msra.mxu0 0.0
  %139 = vmatprep.subr.mxu0 0.0
  %140 = vmatpush2.xpose.msra.mxu0 0.0
  %141 = vmatprep.mubr.f32.mxu0 0.0
  %142 = vmatmul.mubr.f32.gmra.mxu0 %v36
  %v143 = vpop.f32.mrf.mxu0
  %v144 = vadd.f32 0.0, %v143
  %v145 = vpop.f32.mrf.mxu0
  %146 = vmatprep.mubr.f32.mxu0 0.0
  %147 = vmatmul.mubr.f32.gmra.mxu0 %v39
  %v148 = vpop.f32.mrf.mxu0
  %v149 = vadd.f32 0.0, %v148
  %v150 = vpop.f32.mrf.mxu0
  %151 = vdwg.mxu0
  %v152 = vadd.f32 %v18, %v144
  %v153 = vadd.f32 %v19, %v149
  %vm154 = vcmask 785408
  %155 = vst.msk [vmem:[#allocation2] sm:$0xff] %vm154, %v152
  %156 = vst.msk [vmem:[#allocation2 + $0x8] sm:$0xff] %vm154, %v153
  // Predicated region
  $region14: #{moss_attention_forward.3} parent=0 // pred_check
    %p157 = pneg %p11
  $region15: #{moss_attention_forward.3} parent=0 // pred_check_branch
    %159 = sbr.rel (%p157) target = $region17
  $region16: #{moss_attention_forward.3} parent=0 // pred_region
    %v160 = vld [vmem:[#allocation2] sm:$0xff]
    %v161 = vld [vmem:[#allocation2 + $0x8] sm:$0xff]
    %162 = vst.msk [vmem:[%s2] sm:$0xff] %vm154, %v160
    %163 = vst.msk [vmem:[%s2 + $0x8] sm:$0xff] %vm154, %v161
  $region17: #{moss_attention_forward.3} parent=0 // pred_fallthru
    _
  // Predicated region
  $region18: #{moss_attention_forward.3} parent=0 // pred_check
    _
  $region19: #{moss_attention_forward.3} parent=0 // pred_check_branch
    %165 = sbr.rel (0) target = $region21
  $region20: #{moss_attention_forward.3} parent=0 // pred_region
    _
  $region21: #{moss_attention_forward.3} parent=0 // pred_fallthru
    _
  // Predicated region
  $region22: #{moss_attention_forward.3} parent=0 // pred_check
    _
  $region23: #{moss_attention_forward.3} parent=0 // pred_check_branch
    %167 = sbr.rel (0) target = $region25
  $region24: #{moss_attention_forward.3} parent=0 // pred_region
    _
  $region25: #{moss_attention_forward.3} parent=0 // pred_fallthru
    _

// kernel: moss_attention_forward.5
$region0: #{moss_attention_forward.5}
  #allocation0 [shape = 'u32[]', space=smem, size = 0x4, offset = 0x4, fixed_abs, tag = 'smem constant byte address 0x4 - core index']
  #allocation1 [shape = 'u32[144,128]{1,0:T(1,128)}', space=vmem, size = 0x12000, scoped, tag = 'internal scratch']
  #allocation2 [shape = 'f32[16,32]{1,0:T(8,128)}', space=vmem, size = 0x2000, scoped, tag = 'scratch operand']
  %s0 = inlined_call_operand.vmem [shape: f32[16,32], index: 0, kind: input, shape index: {}]
  %s1 = inlined_call_operand.vmem [shape: f32[32,32], index: 1, kind: input, shape index: {}]
  %s2 = inlined_call_operand.hbm [shape: f32[16,32], index: 2, kind: output, shape index: {}]
  %s3 = sld [smem:[#allocation0]]
  $region26: #{moss_attention_forward.5} parent=0
    _
  %s5 = ssub.s32 1, %s3
  %s6 = scalar_select 0, %s5, %s3
  $region1: #{moss_attention_forward.5} parent=0
    #allocation3 [shape = 'u8[8192]{0}', space=vmem, size = 0x2000, scoped, tag = 'output window, operand 0, single buffered']
    #allocation4 [shape = 's32[1]{0}', space=sflag, size = 0x4, scoped, tag = 'scoped memory for moss_attention_forward.5']
    %7 = vsyncpa [#allocation4], 0
    // Predicated region
    $region2: #{moss_attention_forward.5} parent=1 // pred_check
      _
    $region3: #{moss_attention_forward.5} parent=1 // pred_check_branch
      %9 = sbr.rel (0) target = $region5
    $region4: #{moss_attention_forward.5} parent=1 // pred_region
      _
    $region5: #{moss_attention_forward.5} parent=1 // pred_fallthru
      _
    // Predicated region
    $region6: #{moss_attention_forward.5} parent=1 // pred_check
      _
    $region7: #{moss_attention_forward.5} parent=1 // pred_check_branch
      %11 = sbr.rel (0) target = $region9
    $region8: #{moss_attention_forward.5} parent=1 // pred_region
      _
    $region9: #{moss_attention_forward.5} parent=1 // pred_fallthru
      _
    %p12 = scmp.eq.s32.totalorder 0, 0
    // Predicated region
    $region10: #{moss_attention_forward.5} parent=1 // pred_check
      %p13 = pneg %p12
    $region11: #{moss_attention_forward.5} parent=1 // pred_check_branch
      %15 = sbr.rel (%p13) target = $region13
    $region12: #{moss_attention_forward.5} parent=1 // pred_region
      %vm16 = vcmask 261120
      %17 = vst.msk [vmem:[#allocation2] sm:$0xff] %vm16, 0.0
      %18 = vst.msk [vmem:[#allocation2 + $0x8] sm:$0xff] %vm16, 0.0
    $region13: #{moss_attention_forward.5} parent=1 // pred_fallthru
      _
    %v19 = vld [vmem:[#allocation2] sm:$0xff]
    %v20 = vld [vmem:[#allocation2 + $0x8] sm:$0xff]
    %v21 = vld [vmem:[%s0] sm:$0xff]
    %v22 = vld [vmem:[%s0 + $0x8] sm:$0xff]
    %v23 = vld [vmem:[%s1] sm:$0xff]
    %v24 = vld [vmem:[%s1 + $0x8] sm:$0xff]
    %v25 = vld [vmem:[%s1 + $0x10] sm:$0xff]
    %v26 = vld [vmem:[%s1 + $0x18] sm:$0xff]
    %vm27 = vcmask 261120
    %v29 = vsel %vm27, %v21, 0
    %v32 = vsel %vm27, %v22, 0
    %v35 = vsel %vm27, %v23, 0
    %v38 = vsel %vm27, %v24, 0
    %v41 = vsel %vm27, %v25, 0
    %v44 = vsel %vm27, %v26, 0
    %46 = vmatprep.subr.mxu0 0.0
    %47 = vmatpush1.xpose.msra.mxu0 0.0
    %48 = vmatprep.subr.mxu0 0.0
    %49 = vmatpush1.xpose.msra.mxu0 0.0
    %50 = vmatprep.subr.mxu0 0.0
    %51 = vmatpush1.xpose.msra.mxu0 0.0
    %52 = vmatprep.subr.mxu0 0.0
    %53 = vmatpush1.xpose.msra.mxu0 0.0
    %54 = vmatprep.subr.mxu0 0.0
    %55 = vmatpush1.xpose.msra.mxu0 0.0
    %56 = vmatprep.subr.mxu0 0.0
    %57 = vmatpush1.xpose.msra.mxu0 0.0
    %58 = vmatprep.subr.mxu0 0.0
    %59 = vmatpush1.xpose.msra.mxu0 0.0
    %60 = vmatprep.subr.mxu0 0.0
    %61 = vmatpush1.xpose.msra.mxu0 0.0
    %62 = vmatprep.subr.mxu0 0.0
    %63 = vmatpush1.xpose.msra.mxu0 0.0
    %64 = vmatprep.subr.mxu0 0.0
    %65 = vmatpush1.xpose.msra.mxu0 0.0
    %66 = vmatprep.subr.mxu0 0.0
    %67 = vmatpush1.xpose.msra.mxu0 0.0
    %68 = vmatprep.subr.mxu0 0.0
    %69 = vmatpush1.xpose.msra.mxu0 0.0
    %70 = vmatprep.subr.mxu0 0.0
    %71 = vmatpush1.xpose.msra.mxu0 %v44
    %72 = vmatprep.subr.mxu0 0.0
    %73 = vmatpush1.xpose.msra.mxu0 %v41
    %74 = vmatprep.subr.mxu0 0.0
    %75 = vmatpush1.xpose.msra.mxu0 %v38
    %76 = vmatprep.subr.mxu0 0.0
    %77 = vmatpush1.xpose.msra.mxu0 %v35
    %78 = vmatprep.subr.mxu0 0.0
    %79 = vmatpush2.xpose.msra.mxu0 0.0
    %80 = vmatprep.subr.mxu0 0.0
    %81 = vmatpush2.xpose.msra.mxu0 0.0
    %82 = vmatprep.subr.mxu0 0.0
    %83 = vmatpush2.xpose.msra.mxu0 0.0
    %84 = vmatprep.subr.mxu0 0.0
    %85 = vmatpush2.xpose.msra.mxu0 0.0
    %86 = vmatprep.subr.mxu0 0.0
    %87 = vmatpush2.xpose.msra.mxu0 0.0
    %88 = vmatprep.subr.mxu0 0.0
    %89 = vmatpush2.xpose.msra.mxu0 0.0
    %90 = vmatprep.subr.mxu0 0.0
    %91 = vmatpush2.xpose.msra.mxu0 0.0
    %92 = vmatprep.subr.mxu0 0.0
    %93 = vmatpush2.xpose.msra.mxu0 0.0
    %94 = vmatprep.subr.mxu0 0.0
    %95 = vmatpush2.xpose.msra.mxu0 0.0
    %96 = vmatprep.subr.mxu0 0.0
    %97 = vmatpush2.xpose.msra.mxu0 0.0
    %98 = vmatprep.subr.mxu0 0.0
    %99 = vmatpush2.xpose.msra.mxu0 0.0
    %100 = vmatprep.subr.mxu0 0.0
    %101 = vmatpush2.xpose.msra.mxu0 0.0
    %102 = vmatprep.subr.mxu0 0.0
    %103 = vmatpush2.xpose.msra.mxu0 0.0
    %104 = vmatprep.subr.mxu0 0.0
    %105 = vmatpush2.xpose.msra.mxu0 0.0
    %106 = vmatprep.subr.mxu0 0.0
    %107 = vmatpush2.xpose.msra.mxu0 0.0
    %108 = vmatprep.subr.mxu0 0.0
    %109 = vmatpush2.xpose.msra.mxu0 0.0
    %110 = vmatprep.mubr.f32.mxu0 0.0
    %111 = vmatmul.mubr.f32.gmra.mxu0 %v29
    %v112 = vpop.f32.mrf.mxu0
    %v113 = vadd.f32 0.0, %v112
    %v114 = vpop.f32.mrf.mxu0
    %115 = vmatprep.mubr.f32.mxu0 0.0
    %116 = vmatmul.mubr.f32.gmra.mxu0 %v32
    %v117 = vpop.f32.mrf.mxu0
    %v118 = vadd.f32 0.0, %v117
    %v119 = vpop.f32.mrf.mxu0
    %120 = vdwg.mxu0
    %v121 = vadd.f32 %v19, %v113
    %v122 = vadd.f32 %v20, %v118
    %123 = vst.msk [vmem:[#allocation2] sm:$0xff] %vm27, %v121
    %124 = vst.msk [vmem:[#allocation2 + $0x8] sm:$0xff] %vm27, %v122
    // Predicated region
    $region14: #{moss_attention_forward.5} parent=1 // pred_check
      %p125 = pneg %p12
    $region15: #{moss_attention_forward.5} parent=1 // pred_check_branch
      %127 = sbr.rel (%p125) target = $region17
    $region16: #{moss_attention_forward.5} parent=1 // pred_region
      %v128 = vld [vmem:[#allocation2] sm:$0xff]
      %v129 = vld [vmem:[#allocation2 + $0x8] sm:$0xff]
      %130 = vst.msk [vmem:[#allocation3] sm:$0xff] %vm27, %v128
      %131 = vst.msk [vmem:[#allocation3 + $0x8] sm:$0xff] %vm27, %v129
    $region17: #{moss_attention_forward.5} parent=1 // pred_fallthru
      _
    // Predicated region
    $region18: #{moss_attention_forward.5} parent=1 // pred_check
      _
    $region19: #{moss_attention_forward.5} parent=1 // pred_check_branch
      %133 = sbr.rel (0) target = $region21
    $region20: #{moss_attention_forward.5} parent=1 // pred_region
      %s135 = ssub.s32 256, 256
      %136 = vsyncadd [#allocation4], %s135
      %s137 = sshll.u32 [#allocation3], 4
      %s138 = int_to_ptr.vmem [resolvable:$true] %s137
      %143 = dma.vmem_to_hbm [thread:$0]  %s138, 256, %s2, [#allocation4], 128, 128, 8
    $region21: #{moss_attention_forward.5} parent=1 // pred_fallthru
      _
    // Predicated region
    $region22: #{moss_attention_forward.5} parent=1 // pred_check
      _
    $region23: #{moss_attention_forward.5} parent=1 // pred_check_branch
      %145 = sbr.rel (0) target = $region25
    $region24: #{moss_attention_forward.5} parent=1 // pred_region
      %146 = dma.done [#allocation4], 256
    $region25: #{moss_attention_forward.5} parent=1 // pred_fallthru
      _
    %147 = vsyncpa [#allocation4], 1

// kernel: moss_attention_forward.4
$region0: #{moss_attention_forward.4}
  #allocation0 [shape = 'u32[]', space=smem, size = 0x4, offset = 0x4, fixed_abs, tag = 'smem constant byte address 0x4 - core index']
  #allocation1 [shape = 'u32[144,128]{1,0:T(1,128)}', space=vmem, size = 0x12000, scoped, tag = 'internal scratch']
  #allocation2 [shape = 'f32[4,8,1]{2,1,0:T(8,128)}', space=vmem, size = 0x4000, scoped, tag = 'scratch operand']
  #allocation3 [shape = 'f32[4,8,1]{2,1,0:T(8,128)}', space=vmem, size = 0x4000, scoped, tag = 'scratch operand']
  #allocation4 [shape = 'f32[4,8,8]{2,1,0:T(8,128)}', space=vmem, size = 0x4000, scoped, tag = 'scratch operand']
  %s0 = inlined_call_operand.vmem [shape: f32[2,4,8,8], index: 0, kind: input, shape index: {}]
  %s1 = inlined_call_operand.vmem [shape: f32[2,4,8,8], index: 1, kind: input, shape index: {}]
  %s2 = inlined_call_operand.vmem [shape: f32[2,4,8,8], index: 2, kind: input, shape index: {}]
  %s3 = inlined_call_operand.vmem [shape: f32[2,8,32], index: 3, kind: output, shape index: {}]
  %s4 = sld [smem:[#allocation0]]
  $region57: #{moss_attention_forward.4} parent=0
    _
  %s6 = ssub.s32 1, %s4
  %s7 = scalar_select 0, %s6, %s4
  loop: start=0, step=1, limit=4
  $region2: #{moss_attention_forward.4} parent=0 // loop_pre_header
    _
  $region3: #{moss_attention_forward.4} parent=0 // loop_header
    %s9 = sphi 0, %s13
    %p10 = scmp.ge.s32.totalorder %s9, 4
    %s16 = sphi 0, %s35
    %s17 = sphi 0, %s31
    %s18 = sphi 0, %s27
    %s19 = sphi 0, %s16
    %s20 = sphi 0, %s17
    %s21 = sphi 0, %s18
    %s22 = sphi 0, %s19
    %s23 = sphi 0, %s20
    %s24 = sphi 0, %s21
    %s40 = sphi 0, %s42
    %s43 = sphi 0, %s40
    %s44 = sphi 0, %s43
    %s60 = sphi 0, %s44
    %s68 = sphi 0, %s70
    %s71 = sphi 0, %s68
    %s72 = sphi 0, %s71
    %s88 = sphi 0, %s72
    %s96 = sphi 0, %s98
    %s99 = sphi 0, %s96
    %s100 = sphi 0, %s99
    %s116 = sphi 0, %s100
    %s124 = sphi 0, %s126
    %s127 = sphi 0, %s124
    %s128 = sphi 0, %s127
    %s144 = sphi 0, %s128
  $region4: #{moss_attention_forward.4} parent=0 // loop_header_branch
    %12 = sbr.rel (%p10) target = $region8
  $region5: #{moss_attention_forward.4} parent=0 // loop_body
    %s14 = ssub.s32 %s9, 1
    %s15 = ssub.s32 %s9, 2
    %s25 = sadd.s32 1, %s18
    %p26 = scmp.ge.s32.totalorder %s25, 1
    %s27 = scalar_select %p26, 0, %s25
    %s28 = sadd.s32 1, %s17
    %s29 = scalar_select %p26, %s28, %s17
    %p30 = scmp.ge.s32.totalorder %s29, 1
    %s31 = scalar_select %p30, 0, %s29
    %s32 = sadd.s32 1, %s16
    %s33 = scalar_select %p30, %s32, %s16
    %p34 = scmp.ge.s32.totalorder %s33, 2
    %s35 = scalar_select %p34, 0, %s33
    %s36 = ssub.s32 %s16, %s35
    %s37 = ssub.s32 %s17, %s31
    %s38 = sor.u32 %s36, %s37
    %p39 = scmp.eq.s32.totalorder %s38, 0
    %s41 = sadd.s32 %s40, 1
    %s42 = scalar_select %p39, %s40, %s41
    %p45 = pneg %p39
    %p46 = scmp.eq.s32.totalorder %s9, 1
    %p47 = por %p45, %p46
    %p48 = scmp.ne.s32.totalorder %s40, %s43
    %p49 = scmp.eq.s32.totalorder %s9, 0
    %p50 = por %p48, %p49
    %p51 = scmp.ne.s32.totalorder %s40, %s43
    %p52 = scmp.eq.s32.totalorder %s14, 1
    %p53 = por %p51, %p52
    %p54 = scmp.ne.s32.totalorder %s43, %s44
    %p55 = scmp.eq.s32.totalorder %s14, 0
    %p56 = por %p54, %p55
    %p57 = scmp.ne.s32.totalorder %s43, %s44
    %p58 = scmp.eq.s32.totalorder %s15, 1
    %p59 = por %p57, %p58
    %p61 = scmp.ne.s32.totalorder %s44, %s60
    %p62 = scmp.eq.s32.totalorder %s15, 0
    %p63 = por %p61, %p62
    %s64 = ssub.s32 %s16, %s35
    %s65 = ssub.s32 %s18, %s27
    %s66 = sor.u32 %s64, %s65
    %p67 = scmp.eq.s32.totalorder %s66, 0
    %s69 = sadd.s32 %s68, 1
    %s70 = scalar_select %p67, %s68, %s69
    %p73 = pneg %p67
    %p74 = scmp.eq.s32.totalorder %s9, 1
    %p75 = por %p73, %p74
    %p76 = scmp.ne.s32.totalorder %s68, %s71
    %p77 = scmp.eq.s32.totalorder %s9, 0
    %p78 = por %p76, %p77
    %p79 = scmp.ne.s32.totalorder %s68, %s71
    %p80 = scmp.eq.s32.totalorder %s14, 1
    %p81 = por %p79, %p80
    %p82 = scmp.ne.s32.totalorder %s71, %s72
    %p83 = scmp.eq.s32.totalorder %s14, 0
    %p84 = por %p82, %p83
    %p85 = scmp.ne.s32.totalorder %s71, %s72
    %p86 = scmp.eq.s32.totalorder %s15, 1
    %p87 = por %p85, %p86
    %p89 = scmp.ne.s32.totalorder %s72, %s88
    %p90 = scmp.eq.s32.totalorder %s15, 0
    %p91 = por %p89, %p90
    %s92 = ssub.s32 %s16, %s35
    %s93 = ssub.s32 %s18, %s27
    %s94 = sor.u32 %s92, %s93
    %p95 = scmp.eq.s32.totalorder %s94, 0
    %s97 = sadd.s32 %s96, 1
    %s98 = scalar_select %p95, %s96, %s97
    %p101 = pneg %p95
    %p102 = scmp.eq.s32.totalorder %s9, 1
    %p103 = por %p101, %p102
    %p104 = scmp.ne.s32.totalorder %s96, %s99
    %p105 = scmp.eq.s32.totalorder %s9, 0
    %p106 = por %p104, %p105
    %p107 = scmp.ne.s32.totalorder %s96, %s99
    %p108 = scmp.eq.s32.totalorder %s14, 1
    %p109 = por %p107, %p108
    %p110 = scmp.ne.s32.totalorder %s99, %s100
    %p111 = scmp.eq.s32.totalorder %s14, 0
    %p112 = por %p110, %p111
    %p113 = scmp.ne.s32.totalorder %s99, %s100
    %p114 = scmp.eq.s32.totalorder %s15, 1
    %p115 = por %p113, %p114
    %p117 = scmp.ne.s32.totalorder %s100, %s116
    %p118 = scmp.eq.s32.totalorder %s15, 0
    %p119 = por %p117, %p118
    %s120 = ssub.s32 %s16, %s35
    %s121 = ssub.s32 %s17, %s31
    %s122 = sor.u32 %s120, %s121
    %p123 = scmp.eq.s32.totalorder %s122, 0
    %s125 = sadd.s32 %s124, 1
    %s126 = scalar_select %p123, %s124, %s125
    %p129 = pneg %p123
    %p130 = scmp.eq.s32.totalorder %s9, 1
    %p131 = por %p129, %p130
    %p132 = scmp.ne.s32.totalorder %s124, %s127
    %p133 = scmp.eq.s32.totalorder %s9, 0
    %p134 = por %p132, %p133
    %p135 = scmp.ne.s32.totalorder %s124, %s127
    %p136 = scmp.eq.s32.totalorder %s14, 1
    %p137 = por %p135, %p136
    %p138 = scmp.ne.s32.totalorder %s127, %s128
    %p139 = scmp.eq.s32.totalorder %s14, 0
    %p140 = por %p138, %p139
    %p141 = scmp.ne.s32.totalorder %s127, %s128
    %p142 = scmp.eq.s32.totalorder %s15, 1
    %p143 = por %p141, %p142
    %p145 = scmp.ne.s32.totalorder %s128, %s144
    %p146 = scmp.eq.s32.totalorder %s15, 0
    %p147 = por %p145, %p146
    %p148 = scmp.le.s32.totalorder 1, %s9
    %p149 = scmp.lt.s32.totalorder %s9, 3
    %p150 = pnand %p148, %p149
    %p151 = pneg %p150
    // Predicated region
    $region9: #{moss_attention_forward.4} parent=5 // pred_check
      _
    $region10: #{moss_attention_forward.4} parent=5 // pred_check_branch
      %153 = sbr.rel (%p150) target = $region12
    $region11: #{moss_attention_forward.4} parent=5 // pred_region
      %s154 = ssub.s32 %s9, 1
    $region12: #{moss_attention_forward.4} parent=5 // pred_fallthru
      _
    %p155 = scmp.lt.s32.totalorder %s9, 2
    // Predicated region
    $region13: #{moss_attention_forward.4} parent=5 // pred_check
      %p156 = pneg %p155
    $region14: #{moss_attention_forward.4} parent=5 // pred_check_branch
      %158 = sbr.rel (%p156) target = $region16
    $region15: #{moss_attention_forward.4} parent=5 // pred_region
      // Predicated region
      $region17: #{moss_attention_forward.4} parent=15 // pred_check
        %p159 = pneg %p50
      $region18: #{moss_attention_forward.4} parent=15 // pred_check_branch
        %161 = sbr.rel (%p159) target = $region20
      $region19: #{moss_attention_forward.4} parent=15 // pred_region
        %p162 = scmp.lt.s32.totalorder %s16, 1
        %s163 = scalar_select %p162, %s16, 1
        %p164 = scmp.lt.s32.totalorder %s17, 0
        %s165 = scalar_select %p164, %s17, 0
        %s166 = smul.addr %s163, 4
        %s167 = sadd.s32 %s165, %s166
        %s168 = smul.addr %s167, 8
        %s169 = scalar_lea.vmem %s0, %s168
      $region20: #{moss_attention_forward.4} parent=15 // pred_fallthru
        _
      // Predicated region
      $region21: #{moss_attention_forward.4} parent=15 // pred_check
        %p170 = pneg %p78
      $region22: #{moss_attention_forward.4} parent=15 // pred_check_branch
        %172 = sbr.rel (%p170) target = $region24
      $region23: #{moss_attention_forward.4} parent=15 // pred_region
        %p173 = scmp.lt.s32.totalorder %s16, 1
        %s174 = scalar_select %p173, %s16, 1
        %p175 = scmp.lt.s32.totalorder %s18, 0
        %s176 = scalar_select %p175, %s18, 0
        %s177 = smul.addr %s174, 4
        %s178 = sadd.s32 %s176, %s177
        %s179 = smul.addr %s178, 8
        %s180 = scalar_lea.vmem %s1, %s179
      $region24: #{moss_attention_forward.4} parent=15 // pred_fallthru
        _
      // Predicated region
      $region25: #{moss_attention_forward.4} parent=15 // pred_check
        %p181 = pneg %p106
      $region26: #{moss_attention_forward.4} parent=15 // pred_check_branch
        %183 = sbr.rel (%p181) target = $region28
      $region27: #{moss_attention_forward.4} parent=15 // pred_region
        %p184 = scmp.lt.s32.totalorder %s16, 1
        %s185 = scalar_select %p184, %s16, 1
        %p186 = scmp.lt.s32.totalorder %s18, 0
        %s187 = scalar_select %p186, %s18, 0
        %s188 = smul.addr %s185, 4
        %s189 = sadd.s32 %s187, %s188
        %s190 = smul.addr %s189, 8
        %s191 = scalar_lea.vmem %s2, %s190
      $region28: #{moss_attention_forward.4} parent=15 // pred_fallthru
        _
    $region16: #{moss_attention_forward.4} parent=5 // pred_fallthru
      _
    %p192 = scmp.le.s32.totalorder 1, %s9
    %p193 = scmp.lt.s32.totalorder %s9, 3
    %p194 = pnand %p192, %p193
    %p195 = pneg %p194
    // Predicated region
    $region29: #{moss_attention_forward.4} parent=5 // pred_check
      _
    $region30: #{moss_attention_forward.4} parent=5 // pred_check_branch
      %197 = sbr.rel (%p194) target = $region32
    $region31: #{moss_attention_forward.4} parent=5 // pred_region
      %s198 = ssub.s32 %s9, 1
      %p199 = scmp.lt.s32.totalorder %s19, 1
      %s200 = scalar_select %p199, %s19, 1
      %p201 = scmp.lt.s32.totalorder %s20, 0
      %s202 = scalar_select %p201, %s20, 0
      %s203 = smul.addr %s200, 4
      %s204 = sadd.s32 %s202, %s203
      %s205 = smul.addr %s204, 8
      %s206 = scalar_lea.vmem %s0, %s205
      %p207 = pneg %p56
      %p208 = pneg %p53
      %p209 = scmp.lt.s32.totalorder %s19, 1
      %s210 = scalar_select %p209, %s19, 1
      %p211 = scmp.lt.s32.totalorder %s21, 0
      %s212 = scalar_select %p211, %s21, 0
      %s213 = smul.addr %s210, 4
      %s214 = sadd.s32 %s212, %s213
      %s215 = smul.addr %s214, 8
      %s216 = scalar_lea.vmem %s1, %s215
      %p217 = pneg %p84
      %p218 = pneg %p81
      %p219 = scmp.lt.s32.totalorder %s19, 1
      %s220 = scalar_select %p219, %s19, 1
      %p221 = scmp.lt.s32.totalorder %s21, 0
      %s222 = scalar_select %p221, %s21, 0
      %s223 = smul.addr %s220, 4
      %s224 = sadd.s32 %s222, %s223
      %s225 = smul.addr %s224, 8
      %s226 = scalar_lea.vmem %s2, %s225
      %p227 = pneg %p112
      %p228 = pneg %p109
      %p229 = pneg %p140
      %p230 = pneg %p137
      %p231 = scmp.lt.s32.totalorder %s19, 1
      %s232 = scalar_select %p231, %s19, 1
      %p233 = scmp.lt.s32.totalorder %s20, 0
      %s234 = scalar_select %p233, %s20, 0
      %s235 = sadd.s32 %s234, %s232
      %s236 = smul.addr %s235, 8
      %s237 = scalar_lea.vmem %s3, %s236
      %p238 = scmp.lt.s32.totalorder %s19, 1
      %s239 = scalar_select %p238, %s19, 1
      %p240 = scmp.lt.s32.totalorder %s20, 0
      %s241 = scalar_select %p240, %s20, 0
      %s242 = smul.addr %s239, 4
      %s243 = sadd.s32 %s241, %s242
      %s244 = smul.addr %s243, 8
      %s245 = scalar_lea.vmem %s0, %s244
      %p246 = scmp.lt.s32.totalorder %s19, 1
      %s247 = scalar_select %p246, %s19, 1
      %p248 = scmp.lt.s32.totalorder %s21, 0
      %s249 = scalar_select %p248, %s21, 0
      %s250 = smul.addr %s247, 4
      %s251 = sadd.s32 %s249, %s250
      %s252 = smul.addr %s251, 8
      %s253 = scalar_lea.vmem %s1, %s252
      %p254 = scmp.lt.s32.totalorder %s19, 1
      %s255 = scalar_select %p254, %s19, 1
      %p256 = scmp.lt.s32.totalorder %s21, 0
      %s257 = scalar_select %p256, %s21, 0
      %s258 = smul.addr %s255, 4
      %s259 = sadd.s32 %s257, %s258
      %s260 = smul.addr %s259, 8
      %s261 = scalar_lea.vmem %s2, %s260
      %p262 = scmp.lt.s32.totalorder %s19, 1
      %s263 = scalar_select %p262, %s19, 1
      %p264 = scmp.lt.s32.totalorder %s20, 0
      %s265 = scalar_select %p264, %s20, 0
      %s266 = sadd.s32 %s265, %s263
      %s267 = smul.addr %s266, 8
      %s268 = scalar_lea.vmem %s3, %s267
      %p269 = scmp.eq.s32.totalorder %s21, 0
      // Predicated region
      $region33: #{moss_attention_forward.4} parent=31 // pred_check
        %p270 = pneg %p269
      $region34: #{moss_attention_forward.4} parent=31 // pred_check_branch
        %272 = sbr.rel (%p270) target = $region36
      $region35: #{moss_attention_forward.4} parent=31 // pred_region
        %vm273 = vcmask 7168
        %274 = vst.msk [vmem:[#allocation2] sm:$0xff] %vm273, -inf
        %275 = vst.msk [vmem:[#allocation2 + $0x8] sm:$0xff] %vm273, -inf
        %276 = vst.msk [vmem:[#allocation2 + $0x10] sm:$0xff] %vm273, -inf
        %277 = vst.msk [vmem:[#allocation2 + $0x18] sm:$0xff] %vm273, -inf
        %278 = vst.msk [vmem:[#allocation3] sm:$0xff] %vm273, 0.0
        %279 = vst.msk [vmem:[#allocation3 + $0x8] sm:$0xff] %vm273, 0.0
        %280 = vst.msk [vmem:[#allocation3 + $0x10] sm:$0xff] %vm273, 0.0
        %281 = vst.msk [vmem:[#allocation3 + $0x18] sm:$0xff] %vm273, 0.0
        %vm282 = vcmask 64512
        %283 = vst.msk [vmem:[#allocation4] sm:$0xff] %vm282, 0.0
        %284 = vst.msk [vmem:[#allocation4 + $0x8] sm:$0xff] %vm282, 0.0
        %285 = vst.msk [vmem:[#allocation4 + $0x10] sm:$0xff] %vm282, 0.0
        %286 = vst.msk [vmem:[#allocation4 + $0x18] sm:$0xff] %vm282, 0.0
      $region36: #{moss_attention_forward.4} parent=31 // pred_fallthru
        _
      %s287 = smul.u32 %s20, 8
      %s288 = smul.u32 %s21, 8
      %s289 = sadd.s32 %s287, 7
      %p290 = scmp.le.s32.totalorder %s288, %s289
      // Predicated region
      $region37: #{moss_attention_forward.4} parent=31 // pred_check
        %p291 = pneg %p290
      $region38: #{moss_attention_forward.4} parent=31 // pred_check_branch
        %293 = sbr.rel (%p291) target = $region40
      $region39: #{moss_attention_forward.4} parent=31 // pred_region
        %v294 = vld [vmem:[%s245] sm:$0xff]
        %v295 = vld [vmem:[%s245 + $0x8] sm:$0xff]
        %v296 = vld [vmem:[%s245 + $0x10] sm:$0xff]
        %v297 = vld [vmem:[%s245 + $0x18] sm:$0xff]
        %v298 = vmul.f32 %v294, 0.35355338
        %v299 = vmul.f32 %v295, 0.35355338
        %v300 = vmul.f32 %v296, 0.35355338
        %v301 = vmul.f32 %v297, 0.35355338
        %v302 = vld [vmem:[%s253] sm:$0xff]
        %v303 = vld [vmem:[%s253 + $0x8] sm:$0xff]
        %v304 = vld [vmem:[%s253 + $0x10] sm:$0xff]
        %v305 = vld [vmem:[%s253 + $0x18] sm:$0xff]
        %v306 = vld [vmem:[%s261] sm:$0xff]
        %v307 = vld [vmem:[%s261 + $0x8] sm:$0xff]
        %v308 = vld [vmem:[%s261 + $0x10] sm:$0xff]
        %v309 = vld [vmem:[%s261 + $0x18] sm:$0xff]
        %vm310 = vcmask 64512
        %v312 = vsel %vm310, %v298, 0
        %v315 = vsel %vm310, %v302, 0
        %317 = vmatprep.subr.mxu0 0.0
        %318 = vmatpush1.xpose.msra.mxu0 0.0
        %319 = vmatprep.subr.mxu0 0.0
        %320 = vmatpush1.xpose.msra.mxu0 0.0
        %321 = vmatprep.subr.mxu0 0.0
        %322 = vmatpush1.xpose.msra.mxu0 0.0
        %323 = vmatprep.subr.mxu0 0.0
        %324 = vmatpush1.xpose.msra.mxu0 0.0
        %325 = vmatprep.subr.mxu0 0.0
        %326 = vmatpush1.xpose.msra.mxu0 0.0
        %327 = vmatprep.subr.mxu0 0.0
        %328 = vmatpush1.xpose.msra.mxu0 0.0
        %329 = vmatprep.subr.mxu0 0.0
        %330 = vmatpush1.xpose.msra.mxu0 0.0
        %331 = vmatprep.subr.mxu0 0.0
        %332 = vmatpush1.xpose.msra.mxu0 0.0
        %333 = vmatprep.subr.mxu0 0.0
        %334 = vmatpush1.xpose.msra.mxu0 0.0
        %335 = vmatprep.subr.mxu0 0.0
        %336 = vmatpush1.xpose.msra.mxu0 0.0
        %337 = vmatprep.subr.mxu0 0.0
        %338 = vmatpush1.xpose.msra.mxu0 0.0
        %339 = vmatprep.subr.mxu0 0.0
        %340 = vmatpush1.xpose.msra.mxu0 0.0
        %341 = vmatprep.subr.mxu0 0.0
        %342 = vmatpush1.xpose.msra.mxu0 0.0
        %343 = vmatprep.subr.mxu0 0.0
        %344 = vmatpush1.xpose.msra.mxu0 0.0
        %345 = vmatprep.subr.mxu0 0.0
        %346 = vmatpush1.xpose.msra.mxu0 0.0
        %347 = vmatprep.subr.mxu0 0.0
        %348 = vmatpush1.xpose.msra.mxu0 %v315
        %349 = vmatprep.subr.mxu0 0.0
        %350 = vmatpush2.xpose.msra.mxu0 0.0
        %351 = vmatprep.subr.mxu0 0.0
        %352 = vmatpush2.xpose.msra.mxu0 0.0
        %353 = vmatprep.subr.mxu0 0.0
        %354 = vmatpush2.xpose.msra.mxu0 0.0
        %355 = vmatprep.subr.mxu0 0.0
        %356 = vmatpush2.xpose.msra.mxu0 0.0
        %357 = vmatprep.subr.mxu0 0.0
        %358 = vmatpush2.xpose.msra.mxu0 0.0
        %359 = vmatprep.subr.mxu0 0.0
        %360 = vmatpush2.xpose.msra.mxu0 0.0
        %361 = vmatprep.subr.mxu0 0.0
        %362 = vmatpush2.xpose.msra.mxu0 0.0
        %363 = vmatprep.subr.mxu0 0.0
        %364 = vmatpush2.xpose.msra.mxu0 0.0
        %365 = vmatprep.subr.mxu0 0.0
        %366 = vmatpush2.xpose.msra.mxu0 0.0
        %367 = vmatprep.subr.mxu0 0.0
        %368 = vmatpush2.xpose.msra.mxu0 0.0
        %369 = vmatprep.subr.mxu0 0.0
        %370 = vmatpush2.xpose.msra.mxu0 0.0
        %371 = vmatprep.subr.mxu0 0.0
        %372 = vmatpush2.xpose.msra.mxu0 0.0
        %373 = vmatprep.subr.mxu0 0.0
        %374 = vmatpush2.xpose.msra.mxu0 0.0
        %375 = vmatprep.subr.mxu0 0.0
        %376 = vmatpush2.xpose.msra.mxu0 0.0
        %377 = vmatprep.subr.mxu0 0.0
        %378 = vmatpush2.xpose.msra.mxu0 0.0
        %379 = vmatprep.subr.mxu0 0.0
        %380 = vmatpush2.xpose.msra.mxu0 0.0
        %381 = vmatprep.mubr.f32.mxu0 0.0
        %382 = vmatmul.mubr.f32.gmra.mxu0 %v312
        %v383 = vpop.f32.mrf.mxu0
        %v384 = vadd.f32 0.0, %v383
        %v385 = vpop.f32.mrf.mxu0
        %386 = vdwg.mxu0
        %v388 = vsel %vm310, %v299, 0
        %v391 = vsel %vm310, %v303, 0
        %393 = vmatprep.subr.mxu0 0.0
        %394 = vmatpush1.xpose.msra.mxu0 0.0
        %395 = vmatprep.subr.mxu0 0.0
        %396 = vmatpush1.xpose.msra.mxu0 0.0
        %397 = vmatprep.subr.mxu0 0.0
        %398 = vmatpush1.xpose.msra.mxu0 0.0
        %399 = vmatprep.subr.mxu0 0.0
        %400 = vmatpush1.xpose.msra.mxu0 0.0
        %401 = vmatprep.subr.mxu0 0.0
        %402 = vmatpush1.xpose.msra.mxu0 0.0
        %403 = vmatprep.subr.mxu0 0.0
        %404 = vmatpush1.xpose.msra.mxu0 0.0
        %405 = vmatprep.subr.mxu0 0.0
        %406 = vmatpush1.xpose.msra.mxu0 0.0
        %407 = vmatprep.subr.mxu0 0.0
        %408 = vmatpush1.xpose.msra.mxu0 0.0
        %409 = vmatprep.subr.mxu0 0.0
        %410 = vmatpush1.xpose.msra.mxu0 0.0
        %411 = vmatprep.subr.mxu0 0.0
        %412 = vmatpush1.xpose.msra.mxu0 0.0
        %413 = vmatprep.subr.mxu0 0.0
        %414 = vmatpush1.xpose.msra.mxu0 0.0
        %415 = vmatprep.subr.mxu0 0.0
        %416 = vmatpush1.xpose.msra.mxu0 0.0
        %417 = vmatprep.subr.mxu0 0.0
        %418 = vmatpush1.xpose.msra.mxu0 0.0
        %419 = vmatprep.subr.mxu0 0.0
        %420 = vmatpush1.xpose.msra.mxu0 0.0
        %421 = vmatprep.subr.mxu0 0.0
        %422 = vmatpush1.xpose.msra.mxu0 0.0
        %423 = vmatprep.subr.mxu0 0.0
        %424 = vmatpush1.xpose.msra.mxu0 %v391
        %425 = vmatprep.subr.mxu0 0.0
        %426 = vmatpush2.xpose.msra.mxu0 0.0
        %427 = vmatprep.subr.mxu0 0.0
        %428 = vmatpush2.xpose.msra.mxu0 0.0
        %429 = vmatprep.subr.mxu0 0.0
        %430 = vmatpush2.xpose.msra.mxu0 0.0
        %431 = vmatprep.subr.mxu0 0.0
        %432 = vmatpush2.xpose.msra.mxu0 0.0
        %433 = vmatprep.subr.mxu0 0.0
        %434 = vmatpush2.xpose.msra.mxu0 0.0
        %435 = vmatprep.subr.mxu0 0.0
        %436 = vmatpush2.xpose.msra.mxu0 0.0
        %437 = vmatprep.subr.mxu0 0.0
        %438 = vmatpush2.xpose.msra.mxu0 0.0
        %439 = vmatprep.subr.mxu0 0.0
        %440 = vmatpush2.xpose.msra.mxu0 0.0
        %441 = vmatprep.subr.mxu0 0.0
        %442 = vmatpush2.xpose.msra.mxu0 0.0
        %443 = vmatprep.subr.mxu0 0.0
        %444 = vmatpush2.xpose.msra.mxu0 0.0
        %445 = vmatprep.subr.mxu0 0.0
        %446 = vmatpush2.xpose.msra.mxu0 0.0
        %447 = vmatprep.subr.mxu0 0.0
        %448 = vmatpush2.xpose.msra.mxu0 0.0
        %449 = vmatprep.subr.mxu0 0.0
        %450 = vmatpush2.xpose.msra.mxu0 0.0
        %451 = vmatprep.subr.mxu0 0.0
        %452 = vmatpush2.xpose.msra.mxu0 0.0
        %453 = vmatprep.subr.mxu0 0.0
        %454 = vmatpush2.xpose.msra.mxu0 0.0
        %455 = vmatprep.subr.mxu0 0.0
        %456 = vmatpush2.xpose.msra.mxu0 0.0
        %457 = vmatprep.mubr.f32.mxu0 0.0
        %458 = vmatmul.mubr.f32.gmra.mxu0 %v388
        %v459 = vpop.f32.mrf.mxu0
        %v460 = vadd.f32 0.0, %v459
        %v461 = vpop.f32.mrf.mxu0
        %462 = vdwg.mxu0
        %v464 = vsel %vm310, %v300, 0
        %v467 = vsel %vm310, %v304, 0
        %469 = vmatprep.subr.mxu0 0.0
        %470 = vmatpush1.xpose.msra.mxu0 0.0
        %471 = vmatprep.subr.mxu0 0.0
        %472 = vmatpush1.xpose.msra.mxu0 0.0
        %473 = vmatprep.subr.mxu0 0.0
        %474 = vmatpush1.xpose.msra.mxu0 0.0
        %475 = vmatprep.subr.mxu0 0.0
        %476 = vmatpush1.xpose.msra.mxu0 0.0
        %477 = vmatprep.subr.mxu0 0.0
        %478 = vmatpush1.xpose.msra.mxu0 0.0
        %479 = vmatprep.subr.mxu0 0.0
        %480 = vmatpush1.xpose.msra.mxu0 0.0
        %481 = vmatprep.subr.mxu0 0.0
        %482 = vmatpush1.xpose.msra.mxu0 0.0
        %483 = vmatprep.subr.mxu0 0.0
        %484 = vmatpush1.xpose.msra.mxu0 0.0
        %485 = vmatprep.subr.mxu0 0.0
        %486 = vmatpush1.xpose.msra.mxu0 0.0
        %487 = vmatprep.subr.mxu0 0.0
        %488 = vmatpush1.xpose.msra.mxu0 0.0
        %489 = vmatprep.subr.mxu0 0.0
        %490 = vmatpush1.xpose.msra.mxu0 0.0
        %491 = vmatprep.subr.mxu0 0.0
        %492 = vmatpush1.xpose.msra.mxu0 0.0
        %493 = vmatprep.subr.mxu0 0.0
        %494 = vmatpush1.xpose.msra.mxu0 0.0
        %495 = vmatprep.subr.mxu0 0.0
        %496 = vmatpush1.xpose.msra.mxu0 0.0
        %497 = vmatprep.subr.mxu0 0.0
        %498 = vmatpush1.xpose.msra.mxu0 0.0
        %499 = vmatprep.subr.mxu0 0.0
        %500 = vmatpush1.xpose.msra.mxu0 %v467
        %501 = vmatprep.subr.mxu0 0.0
        %502 = vmatpush2.xpose.msra.mxu0 0.0
        %503 = vmatprep.subr.mxu0 0.0
        %504 = vmatpush2.xpose.msra.mxu0 0.0
        %505 = vmatprep.subr.mxu0 0.0
        %506 = vmatpush2.xpose.msra.mxu0 0.0
        %507 = vmatprep.subr.mxu0 0.0
        %508 = vmatpush2.xpose.msra.mxu0 0.0
        %509 = vmatprep.subr.mxu0 0.0
        %510 = vmatpush2.xpose.msra.mxu0 0.0
        %511 = vmatprep.subr.mxu0 0.0
        %512 = vmatpush2.xpose.msra.mxu0 0.0
        %513 = vmatprep.subr.mxu0 0.0
        %514 = vmatpush2.xpose.msra.mxu0 0.0
        %515 = vmatprep.subr.mxu0 0.0
        %516 = vmatpush2.xpose.msra.mxu0 0.0
        %517 = vmatprep.subr.mxu0 0.0
        %518 = vmatpush2.xpose.msra.mxu0 0.0
        %519 = vmatprep.subr.mxu0 0.0
        %520 = vmatpush2.xpose.msra.mxu0 0.0
        %521 = vmatprep.subr.mxu0 0.0
        %522 = vmatpush2.xpose.msra.mxu0 0.0
        %523 = vmatprep.subr.mxu0 0.0
        %524 = vmatpush2.xpose.msra.mxu0 0.0
        %525 = vmatprep.subr.mxu0 0.0
        %526 = vmatpush2.xpose.msra.mxu0 0.0
        %527 = vmatprep.subr.mxu0 0.0
        %528 = vmatpush2.xpose.msra.mxu0 0.0
        %529 = vmatprep.subr.mxu0 0.0
        %530 = vmatpush2.xpose.msra.mxu0 0.0
        %531 = vmatprep.subr.mxu0 0.0
        %532 = vmatpush2.xpose.msra.mxu0 0.0
        %533 = vmatprep.mubr.f32.mxu0 0.0
        %534 = vmatmul.mubr.f32.gmra.mxu0 %v464
        %v535 = vpop.f32.mrf.mxu0
        %v536 = vadd.f32 0.0, %v535
        %v537 = vpop.f32.mrf.mxu0
        %538 = vdwg.mxu0
        %v540 = vsel %vm310, %v301, 0
        %v543 = vsel %vm310, %v305, 0
        %545 = vmatprep.subr.mxu0 0.0
        %546 = vmatpush1.xpose.msra.mxu0 0.0
        %547 = vmatprep.subr.mxu0 0.0
        %548 = vmatpush1.xpose.msra.mxu0 0.0
        %549 = vmatprep.subr.mxu0 0.0
        %550 = vmatpush1.xpose.msra.mxu0 0.0
        %551 = vmatprep.subr.mxu0 0.0
        %552 = vmatpush1.xpose.msra.mxu0 0.0
        %553 = vmatprep.subr.mxu0 0.0
        %554 = vmatpush1.xpose.msra.mxu0 0.0
        %555 = vmatprep.subr.mxu0 0.0
        %556 = vmatpush1.xpose.msra.mxu0 0.0
        %557 = vmatprep.subr.mxu0 0.0
        %558 = vmatpush1.xpose.msra.mxu0 0.0
        %559 = vmatprep.subr.mxu0 0.0
        %560 = vmatpush1.xpose.msra.mxu0 0.0
        %561 = vmatprep.subr.mxu0 0.0
        %562 = vmatpush1.xpose.msra.mxu0 0.0
        %563 = vmatprep.subr.mxu0 0.0
        %564 = vmatpush1.xpose.msra.mxu0 0.0
        %565 = vmatprep.subr.mxu0 0.0
        %566 = vmatpush1.xpose.msra.mxu0 0.0
        %567 = vmatprep.subr.mxu0 0.0
        %568 = vmatpush1.xpose.msra.mxu0 0.0
        %569 = vmatprep.subr.mxu0 0.0
        %570 = vmatpush1.xpose.msra.mxu0 0.0
        %571 = vmatprep.subr.mxu0 0.0
        %572 = vmatpush1.xpose.msra.mxu0 0.0
        %573 = vmatprep.subr.mxu0 0.0
        %574 = vmatpush1.xpose.msra.mxu0 0.0
        %575 = vmatprep.subr.mxu0 0.0
        %576 = vmatpush1.xpose.msra.mxu0 %v543
        %577 = vmatprep.subr.mxu0 0.0
        %578 = vmatpush2.xpose.msra.mxu0 0.0
        %579 = vmatprep.subr.mxu0 0.0
        %580 = vmatpush2.xpose.msra.mxu0 0.0
        %581 = vmatprep.subr.mxu0 0.0
        %582 = vmatpush2.xpose.msra.mxu0 0.0
        %583 = vmatprep.subr.mxu0 0.0
        %584 = vmatpush2.xpose.msra.mxu0 0.0
        %585 = vmatprep.subr.mxu0 0.0
        %586 = vmatpush2.xpose.msra.mxu0 0.0
        %587 = vmatprep.subr.mxu0 0.0
        %588 = vmatpush2.xpose.msra.mxu0 0.0
        %589 = vmatprep.subr.mxu0 0.0
        %590 = vmatpush2.xpose.msra.mxu0 0.0
        %591 = vmatprep.subr.mxu0 0.0
        %592 = vmatpush2.xpose.msra.mxu0 0.0
        %593 = vmatprep.subr.mxu0 0.0
        %594 = vmatpush2.xpose.msra.mxu0 0.0
        %595 = vmatprep.subr.mxu0 0.0
        %596 = vmatpush2.xpose.msra.mxu0 0.0
        %597 = vmatprep.subr.mxu0 0.0
        %598 = vmatpush2.xpose.msra.mxu0 0.0
        %599 = vmatprep.subr.mxu0 0.0
        %600 = vmatpush2.xpose.msra.mxu0 0.0
        %601 = vmatprep.subr.mxu0 0.0
        %602 = vmatpush2.xpose.msra.mxu0 0.0
        %603 = vmatprep.subr.mxu0 0.0
        %604 = vmatpush2.xpose.msra.mxu0 0.0
        %605 = vmatprep.subr.mxu0 0.0
        %606 = vmatpush2.xpose.msra.mxu0 0.0
        %607 = vmatprep.subr.mxu0 0.0
        %608 = vmatpush2.xpose.msra.mxu0 0.0
        %609 = vmatprep.mubr.f32.mxu0 0.0
        %610 = vmatmul.mubr.f32.gmra.mxu0 %v540
        %v611 = vpop.f32.mrf.mxu0
        %v612 = vadd.f32 0.0, %v611
        %v613 = vpop.f32.mrf.mxu0
        %614 = vdwg.mxu0
        %v615 = vlaneseq
        %v616 = vshrl.u32 %v615, 7
        %v617 = vstv %s287
        %v618 = vadd.s32 %v617, %v616
        %v619 = vlaneseq
        %v620 = vand.u32 %v619, 127
        %v621 = vstv %s288
        %v622 = vadd.s32 %v621, %v620
        %vm623 = vcmp.le.s32.totalorder %v622, %v618
        %v624 = vsel %vm623, 1, 0
        %vm625 = vcmp.eq.s32.totalorder %v624, 1
        %v626 = vsel %vm625, %v384, -3.4028235e+38
        %v627 = vsel %vm625, %v460, -3.4028235e+38
        %v628 = vsel %vm625, %v536, -3.4028235e+38
        %v629 = vsel %vm625, %v612, -3.4028235e+38
        %v630 = vld [vmem:[#allocation2] sm:$0xff]
        %v631 = vld [vmem:[#allocation2 + $0x8] sm:$0xff]
        %v632 = vld [vmem:[#allocation2 + $0x10] sm:$0xff]
        %v633 = vld [vmem:[#allocation2 + $0x18] sm:$0xff]
        %v634 = vsel %vm310, %v626, -inf
        %635 = vmax.xlane.f32.xlu0 %v634
        %v636 = vpop.xlane.xlu0 %635
        %v637 = vsel %vm310, %v627, -inf
        %638 = vmax.xlane.f32.xlu0 %v637
        %v639 = vpop.xlane.xlu0 %638
        %v640 = vsel %vm310, %v628, -inf
        %641 = vmax.xlane.f32.xlu0 %v640
        %v642 = vpop.xlane.xlu0 %641
        %v643 = vsel %vm310, %v629, -inf
        %644 = vmax.xlane.f32.xlu0 %v643
        %v645 = vpop.xlane.xlu0 %644
        %v646 = vmax.f32 %v630, %v636
        %v647 = vmax.f32 %v631, %v639
        %v648 = vmax.f32 %v632, %v642
        %v649 = vmax.f32 %v633, %v645
        %v650 = vsub.f32 %v630, %v646
        %v651 = vsub.f32 %v631, %v647
        %v652 = vsub.f32 %v632, %v648
        %v653 = vsub.f32 %v633, %v649
        %v654 = vmul.f32 %v650, 1.442695
        %v655 = vpow.pop %v654
        %v656 = vmul.f32 %v651, 1.442695
        %v657 = vpow.pop %v656
        %v658 = vmul.f32 %v652, 1.442695
        %v659 = vpow.pop %v658
        %v660 = vmul.f32 %v653, 1.442695
        %v661 = vpow.pop %v660
        %663 = vset.pattern.permute.xlu0 0
        %664 = vperm.xlu0 %663, %v646
        %v665 = vpop.permute.xlu0 %664
        %668 = vset.pattern.permute.xlu0 0
        %669 = vperm.xlu0 %668, %v647
        %v670 = vpop.permute.xlu0 %669
        %673 = vset.pattern.permute.xlu0 0
        %674 = vperm.xlu0 %673, %v648
        %v675 = vpop.permute.xlu0 %674
        %678 = vset.pattern.permute.xlu0 0
        %679 = vperm.xlu0 %678, %v649
        %v680 = vpop.permute.xlu0 %679
        %v682 = vsub.f32 %v626, %v665
        %v683 = vsub.f32 %v627, %v670
        %v684 = vsub.f32 %v628, %v675
        %v685 = vsub.f32 %v629, %v680
        %v686 = vmul.f32 %v682, 1.442695
        %v687 = vpow.pop %v686
        %v688 = vmul.f32 %v683, 1.442695
        %v689 = vpow.pop %v688
        %v690 = vmul.f32 %v684, 1.442695
        %v691 = vpow.pop %v690
        %v692 = vmul.f32 %v685, 1.442695
        %v693 = vpow.pop %v692
        %v694 = vld [vmem:[#allocation3] sm:$0xff]
        %v695 = vld [vmem:[#allocation3 + $0x8] sm:$0xff]
        %v696 = vld [vmem:[#allocation3 + $0x10] sm:$0xff]
        %v697 = vld [vmem:[#allocation3 + $0x18] sm:$0xff]
        %v698 = vmul.f32 %v655, %v694
        %v699 = vmul.f32 %v657, %v695
        %v700 = vmul.f32 %v659, %v696
        %v701 = vmul.f32 %v661, %v697
        %v702 = vsel %vm310, %v687, 0.0
        %703 = vadd.xlane.f32.xlu0 %v702
        %v704 = vpop.xlane.xlu0 %703
        %v705 = vsel %vm310, %v689, 0.0
        %706 = vadd.xlane.f32.xlu0 %v705
        %v707 = vpop.xlane.xlu0 %706
        %v708 = vsel %vm310, %v691, 0.0
        %709 = vadd.xlane.f32.xlu0 %v708
        %v710 = vpop.xlane.xlu0 %709
        %v711 = vsel %vm310, %v693, 0.0
        %712 = vadd.xlane.f32.xlu0 %v711
        %v713 = vpop.xlane.xlu0 %712
        %v714 = vadd.f32 %v698, %v704
        %v715 = vadd.f32 %v699, %v707
        %v716 = vadd.f32 %v700, %v710
        %v717 = vadd.f32 %v701, %v713
        %vm718 = vcmask 7168
        %719 = vst.msk [vmem:[#allocation3] sm:$0xff] %vm718, %v714
        %720 = vst.msk [vmem:[#allocation3 + $0x8] sm:$0xff] %vm718, %v715
        %721 = vst.msk [vmem:[#allocation3 + $0x10] sm:$0xff] %vm718, %v716
        %722 = vst.msk [vmem:[#allocation3 + $0x18] sm:$0xff] %vm718, %v717
        %v723 = vld [vmem:[#allocation4] sm:$0xff]
        %v724 = vld [vmem:[#allocation4 + $0x8] sm:$0xff]
        %v725 = vld [vmem:[#allocation4 + $0x10] sm:$0xff]
        %v726 = vld [vmem:[#allocation4 + $0x18] sm:$0xff]
        %728 = vset.pattern.permute.xlu0 0
        %729 = vperm.xlu0 %728, %v655
        %v730 = vpop.permute.xlu0 %729
        %733 = vset.pattern.permute.xlu0 0
        %734 = vperm.xlu0 %733, %v657
        %v735 = vpop.permute.xlu0 %734
        %738 = vset.pattern.permute.xlu0 0
        %739 = vperm.xlu0 %738, %v659
        %v740 = vpop.permute.xlu0 %739
        %743 = vset.pattern.permute.xlu0 0
        %744 = vperm.xlu0 %743, %v661
        %v745 = vpop.permute.xlu0 %744
        %v747 = vmul.f32 %v730, %v723
        %v748 = vmul.f32 %v735, %v724
        %v749 = vmul.f32 %v740, %v725
        %v750 = vmul.f32 %v745, %v726
        %v752 = vsel %vm310, %v687, 0
        %754 = vmatprep.subr.mxu0 0.0
        %755 = vmatpush1.msra.mxu0 0.0
        %756 = vmatprep.subr.mxu0 0.0
        %757 = vmatpush1.msra.mxu0 0.0
        %758 = vmatprep.subr.mxu0 0.0
        %759 = vmatpush1.msra.mxu0 0.0
        %760 = vmatprep.subr.mxu0 0.0
        %761 = vmatpush1.msra.mxu0 0.0
        %762 = vmatprep.subr.mxu0 0.0
        %763 = vmatpush1.msra.mxu0 0.0
        %764 = vmatprep.subr.mxu0 0.0
        %765 = vmatpush1.msra.mxu0 0.0
        %766 = vmatprep.subr.mxu0 0.0
        %767 = vmatpush1.msra.mxu0 0.0
        %768 = vmatprep.subr.mxu0 0.0
        %769 = vmatpush1.msra.mxu0 0.0
        %770 = vmatprep.subr.mxu0 0.0
        %771 = vmatpush1.msra.mxu0 0.0
        %772 = vmatprep.subr.mxu0 0.0
        %773 = vmatpush1.msra.mxu0 0.0
        %774 = vmatprep.subr.mxu0 0.0
        %775 = vmatpush1.msra.mxu0 0.0
        %776 = vmatprep.subr.mxu0 0.0
        %777 = vmatpush1.msra.mxu0 0.0
        %778 = vmatprep.subr.mxu0 0.0
        %779 = vmatpush1.msra.mxu0 0.0
        %780 = vmatprep.subr.mxu0 0.0
        %781 = vmatpush1.msra.mxu0 0.0
        %782 = vmatprep.subr.mxu0 0.0
        %783 = vmatpush1.msra.mxu0 0.0
        %784 = vmatprep.subr.mxu0 0.0
        %785 = vmatpush1.msra.mxu0 %v306
        %786 = vmatprep.subr.mxu0 0.0
        %787 = vmatpush2.msra.mxu0 0.0
        %788 = vmatprep.subr.mxu0 0.0
        %789 = vmatpush2.msra.mxu0 0.0
        %790 = vmatprep.subr.mxu0 0.0
        %791 = vmatpush2.msra.mxu0 0.0
        %792 = vmatprep.subr.mxu0 0.0
        %793 = vmatpush2.msra.mxu0 0.0
        %794 = vmatprep.subr.mxu0 0.0
        %795 = vmatpush2.msra.mxu0 0.0
        %796 = vmatprep.subr.mxu0 0.0
        %797 = vmatpush2.msra.mxu0 0.0
        %798 = vmatprep.subr.mxu0 0.0
        %799 = vmatpush2.msra.mxu0 0.0
        %800 = vmatprep.subr.mxu0 0.0
        %801 = vmatpush2.msra.mxu0 0.0
        %802 = vmatprep.subr.mxu0 0.0
        %803 = vmatpush2.msra.mxu0 0.0
        %804 = vmatprep.subr.mxu0 0.0
        %805 = vmatpush2.msra.mxu0 0.0
        %806 = vmatprep.subr.mxu0 0.0
        %807 = vmatpush2.msra.mxu0 0.0
        %808 = vmatprep.subr.mxu0 0.0
        %809 = vmatpush2.msra.mxu0 0.0
        %810 = vmatprep.subr.mxu0 0.0
        %811 = vmatpush2.msra.mxu0 0.0
        %812 = vmatprep.subr.mxu0 0.0
        %813 = vmatpush2.msra.mxu0 0.0
        %814 = vmatprep.subr.mxu0 0.0
        %815 = vmatpush2.msra.mxu0 0.0
        %816 = vmatprep.subr.mxu0 0.0
        %817 = vmatpush2.msra.mxu0 0.0
        %818 = vmatprep.mubr.f32.mxu0 0.0
        %819 = vmatmul.mubr.f32.gmra.mxu0 %v752
        %v820 = vpop.f32.mrf.mxu0
        %v821 = vadd.f32 0.0, %v820
        %v822 = vpop.f32.mrf.mxu0
        %823 = vdwg.mxu0
        %v825 = vsel %vm310, %v689, 0
        %827 = vmatprep.subr.mxu0 0.0
        %828 = vmatpush1.msra.mxu0 0.0
        %829 = vmatprep.subr.mxu0 0.0
        %830 = vmatpush1.msra.mxu0 0.0
        %831 = vmatprep.subr.mxu0 0.0
        %832 = vmatpush1.msra.mxu0 0.0
        %833 = vmatprep.subr.mxu0 0.0
        %834 = vmatpush1.msra.mxu0 0.0
        %835 = vmatprep.subr.mxu0 0.0
        %836 = vmatpush1.msra.mxu0 0.0
        %837 = vmatprep.subr.mxu0 0.0
        %838 = vmatpush1.msra.mxu0 0.0
        %839 = vmatprep.subr.mxu0 0.0
        %840 = vmatpush1.msra.mxu0 0.0
        %841 = vmatprep.subr.mxu0 0.0
        %842 = vmatpush1.msra.mxu0 0.0
        %843 = vmatprep.subr.mxu0 0.0
        %844 = vmatpush1.msra.mxu0 0.0
        %845 = vmatprep.subr.mxu0 0.0
        %846 = vmatpush1.msra.mxu0 0.0
        %847 = vmatprep.subr.mxu0 0.0
        %848 = vmatpush1.msra.mxu0 0.0
        %849 = vmatprep.subr.mxu0 0.0
        %850 = vmatpush1.msra.mxu0 0.0
        %851 = vmatprep.subr.mxu0 0.0
        %852 = vmatpush1.msra.mxu0 0.0
        %853 = vmatprep.subr.mxu0 0.0
        %854 = vmatpush1.msra.mxu0 0.0
        %855 = vmatprep.subr.mxu0 0.0
        %856 = vmatpush1.msra.mxu0 0.0
        %857 = vmatprep.subr.mxu0 0.0
        %858 = vmatpush1.msra.mxu0 %v307
        %859 = vmatprep.subr.mxu0 0.0
        %860 = vmatpush2.msra.mxu0 0.0
        %861 = vmatprep.subr.mxu0 0.0
        %862 = vmatpush2.msra.mxu0 0.0
        %863 = vmatprep.subr.mxu0 0.0
        %864 = vmatpush2.msra.mxu0 0.0
        %865 = vmatprep.subr.mxu0 0.0
        %866 = vmatpush2.msra.mxu0 0.0
        %867 = vmatprep.subr.mxu0 0.0
        %868 = vmatpush2.msra.mxu0 0.0
        %869 = vmatprep.subr.mxu0 0.0
        %870 = vmatpush2.msra.mxu0 0.0
        %871 = vmatprep.subr.mxu0 0.0
        %872 = vmatpush2.msra.mxu0 0.0
        %873 = vmatprep.subr.mxu0 0.0
        %874 = vmatpush2.msra.mxu0 0.0
        %875 = vmatprep.subr.mxu0 0.0
        %876 = vmatpush2.msra.mxu0 0.0
        %877 = vmatprep.subr.mxu0 0.0
        %878 = vmatpush2.msra.mxu0 0.0
        %879 = vmatprep.subr.mxu0 0.0
        %880 = vmatpush2.msra.mxu0 0.0
        %881 = vmatprep.subr.mxu0 0.0
        %882 = vmatpush2.msra.mxu0 0.0
        %883 = vmatprep.subr.mxu0 0.0
        %884 = vmatpush2.msra.mxu0 0.0
        %885 = vmatprep.subr.mxu0 0.0
        %886 = vmatpush2.msra.mxu0 0.0
        %887 = vmatprep.subr.mxu0 0.0
        %888 = vmatpush2.msra.mxu0 0.0
        %889 = vmatprep.subr.mxu0 0.0
        %890 = vmatpush2.msra.mxu0 0.0
        %891 = vmatprep.mubr.f32.mxu0 0.0
        %892 = vmatmul.mubr.f32.gmra.mxu0 %v825
        %v893 = vpop.f32.mrf.mxu0
        %v894 = vadd.f32 0.0, %v893
        %v895 = vpop.f32.mrf.mxu0
        %896 = vdwg.mxu0
        %v898 = vsel %vm310, %v691, 0
        %900 = vmatprep.subr.mxu0 0.0
        %901 = vmatpush1.msra.mxu0 0.0
        %902 = vmatprep.subr.mxu0 0.0
        %903 = vmatpush1.msra.mxu0 0.0
        %904 = vmatprep.subr.mxu0 0.0
        %905 = vmatpush1.msra.mxu0 0.0
        %906 = vmatprep.subr.mxu0 0.0
        %907 = vmatpush1.msra.mxu0 0.0
        %908 = vmatprep.subr.mxu0 0.0
        %909 = vmatpush1.msra.mxu0 0.0
        %910 = vmatprep.subr.mxu0 0.0
        %911 = vmatpush1.msra.mxu0 0.0
        %912 = vmatprep.subr.mxu0 0.0
        %913 = vmatpush1.msra.mxu0 0.0
        %914 = vmatprep.subr.mxu0 0.0
        %915 = vmatpush1.msra.mxu0 0.0
        %916 = vmatprep.subr.mxu0 0.0
        %917 = vmatpush1.msra.mxu0 0.0
        %918 = vmatprep.subr.mxu0 0.0
        %919 = vmatpush1.msra.mxu0 0.0
        %920 = vmatprep.subr.mxu0 0.0
        %921 = vmatpush1.msra.mxu0 0.0
        %922 = vmatprep.subr.mxu0 0.0
        %923 = vmatpush1.msra.mxu0 0.0
        %924 = vmatprep.subr.mxu0 0.0
        %925 = vmatpush1.msra.mxu0 0.0
        %926 = vmatprep.subr.mxu0 0.0
        %927 = vmatpush1.msra.mxu0 0.0
        %928 = vmatprep.subr.mxu0 0.0
        %929 = vmatpush1.msra.mxu0 0.0
        %930 = vmatprep.subr.mxu0 0.0
        %931 = vmatpush1.msra.mxu0 %v308
        %932 = vmatprep.subr.mxu0 0.0
        %933 = vmatpush2.msra.mxu0 0.0
        %934 = vmatprep.subr.mxu0 0.0
        %935 = vmatpush2.msra.mxu0 0.0
        %936 = vmatprep.subr.mxu0 0.0
        %937 = vmatpush2.msra.mxu0 0.0
        %938 = vmatprep.subr.mxu0 0.0
        %939 = vmatpush2.msra.mxu0 0.0
        %940 = vmatprep.subr.mxu0 0.0
        %941 = vmatpush2.msra.mxu0 0.0
        %942 = vmatprep.subr.mxu0 0.0
        %943 = vmatpush2.msra.mxu0 0.0
        %944 = vmatprep.subr.mxu0 0.0
        %945 = vmatpush2.msra.mxu0 0.0
        %946 = vmatprep.subr.mxu0 0.0
        %947 = vmatpush2.msra.mxu0 0.0
        %948 = vmatprep.subr.mxu0 0.0
        %949 = vmatpush2.msra.mxu0 0.0
        %950 = vmatprep.subr.mxu0 0.0
        %951 = vmatpush2.msra.mxu0 0.0
        %952 = vmatprep.subr.mxu0 0.0
        %953 = vmatpush2.msra.mxu0 0.0
        %954 = vmatprep.subr.mxu0 0.0
        %955 = vmatpush2.msra.mxu0 0.0
        %956 = vmatprep.subr.mxu0 0.0
        %957 = vmatpush2.msra.mxu0 0.0
        %958 = vmatprep.subr.mxu0 0.0
        %959 = vmatpush2.msra.mxu0 0.0
        %960 = vmatprep.subr.mxu0 0.0
        %961 = vmatpush2.msra.mxu0 0.0
        %962 = vmatprep.subr.mxu0 0.0
        %963 = vmatpush2.msra.mxu0 0.0
        %964 = vmatprep.mubr.f32.mxu0 0.0
        %965 = vmatmul.mubr.f32.gmra.mxu0 %v898
        %v966 = vpop.f32.mrf.mxu0
        %v967 = vadd.f32 0.0, %v966
        %v968 = vpop.f32.mrf.mxu0
        %969 = vdwg.mxu0
        %v971 = vsel %vm310, %v693, 0
        %973 = vmatprep.subr.mxu0 0.0
        %974 = vmatpush1.msra.mxu0 0.0
        %975 = vmatprep.subr.mxu0 0.0
        %976 = vmatpush1.msra.mxu0 0.0
        %977 = vmatprep.subr.mxu0 0.0
        %978 = vmatpush1.msra.mxu0 0.0
        %979 = vmatprep.subr.mxu0 0.0
        %980 = vmatpush1.msra.mxu0 0.0
        %981 = vmatprep.subr.mxu0 0.0
        %982 = vmatpush1.msra.mxu0 0.0
        %983 = vmatprep.subr.mxu0 0.0
        %984 = vmatpush1.msra.mxu0 0.0
        %985 = vmatprep.subr.mxu0 0.0
        %986 = vmatpush1.msra.mxu0 0.0
        %987 = vmatprep.subr.mxu0 0.0
        %988 = vmatpush1.msra.mxu0 0.0
        %989 = vmatprep.subr.mxu0 0.0
        %990 = vmatpush1.msra.mxu0 0.0
        %991 = vmatprep.subr.mxu0 0.0
        %992 = vmatpush1.msra.mxu0 0.0
        %993 = vmatprep.subr.mxu0 0.0
        %994 = vmatpush1.msra.mxu0 0.0
        %995 = vmatprep.subr.mxu0 0.0
        %996 = vmatpush1.msra.mxu0 0.0
        %997 = vmatprep.subr.mxu0 0.0
        %998 = vmatpush1.msra.mxu0 0.0
        %999 = vmatprep.subr.mxu0 0.0
        %1000 = vmatpush1.msra.mxu0 0.0
        %1001 = vmatprep.subr.mxu0 0.0
        %1002 = vmatpush1.msra.mxu0 0.0
        %1003 = vmatprep.subr.mxu0 0.0
        %1004 = vmatpush1.msra.mxu0 %v309
        %1005 = vmatprep.subr.mxu0 0.0
        %1006 = vmatpush2.msra.mxu0 0.0
        %1007 = vmatprep.subr.mxu0 0.0
        %1008 = vmatpush2.msra.mxu0 0.0
        %1009 = vmatprep.subr.mxu0 0.0
        %1010 = vmatpush2.msra.mxu0 0.0
        %1011 = vmatprep.subr.mxu0 0.0
        %1012 = vmatpush2.msra.mxu0 0.0
        %1013 = vmatprep.subr.mxu0 0.0
        %1014 = vmatpush2.msra.mxu0 0.0
        %1015 = vmatprep.subr.mxu0 0.0
        %1016 = vmatpush2.msra.mxu0 0.0
        %1017 = vmatprep.subr.mxu0 0.0
        %1018 = vmatpush2.msra.mxu0 0.0
        %1019 = vmatprep.subr.mxu0 0.0
        %1020 = vmatpush2.msra.mxu0 0.0
        %1021 = vmatprep.subr.mxu0 0.0
        %1022 = vmatpush2.msra.mxu0 0.0
        %1023 = vmatprep.subr.mxu0 0.0
        %1024 = vmatpush2.msra.mxu0 0.0
        %1025 = vmatprep.subr.mxu0 0.0
        %1026 = vmatpush2.msra.mxu0 0.0
        %1027 = vmatprep.subr.mxu0 0.0
        %1028 = vmatpush2.msra.mxu0 0.0
        %1029 = vmatprep.subr.mxu0 0.0
        %1030 = vmatpush2.msra.mxu0 0.0
        %1031 = vmatprep.subr.mxu0 0.0
        %1032 = vmatpush2.msra.mxu0 0.0
        %1033 = vmatprep.subr.mxu0 0.0
        %1034 = vmatpush2.msra.mxu0 0.0
        %1035 = vmatprep.subr.mxu0 0.0
        %1036 = vmatpush2.msra.mxu0 0.0
        %1037 = vmatprep.mubr.f32.mxu0 0.0
        %1038 = vmatmul.mubr.f32.gmra.mxu0 %v971
        %v1039 = vpop.f32.mrf.mxu0
        %v1040 = vadd.f32 0.0, %v1039
        %v1041 = vpop.f32.mrf.mxu0
        %1042 = vdwg.mxu0
        %v1043 = vadd.f32 %v747, %v821
        %v1044 = vadd.f32 %v748, %v894
        %v1045 = vadd.f32 %v749, %v967
        %v1046 = vadd.f32 %v750, %v1040
        %1047 = vst.msk [vmem:[#allocation4] sm:$0xff] %vm310, %v1043
        %1048 = vst.msk [vmem:[#allocation4 + $0x8] sm:$0xff] %vm310, %v1044
        %1049 = vst.msk [vmem:[#allocation4 + $0x10] sm:$0xff] %vm310, %v1045
        %1050 = vst.msk [vmem:[#allocation4 + $0x18] sm:$0xff] %vm310, %v1046
        %1051 = vst.msk [vmem:[#allocation2] sm:$0xff] %vm718, %v646
        %1052 = vst.msk [vmem:[#allocation2 + $0x8] sm:$0xff] %vm718, %v647
        %1053 = vst.msk [vmem:[#allocation2 + $0x10] sm:$0xff] %vm718, %v648
        %1054 = vst.msk [vmem:[#allocation2 + $0x18] sm:$0xff] %vm718, %v649
      $region40: #{moss_attention_forward.4} parent=31 // pred_fallthru
        _
      // Predicated region
      $region41: #{moss_attention_forward.4} parent=31 // pred_check
        %p1055 = pneg %p269
      $region42: #{moss_attention_forward.4} parent=31 // pred_check_branch
        %1057 = sbr.rel (%p1055) target = $region44
      $region43: #{moss_attention_forward.4} parent=31 // pred_region
        %v1058 = vld [vmem:[#allocation3] sm:$0xff]
        %v1059 = vld [vmem:[#allocation3 + $0x8] sm:$0xff]
        %v1060 = vld [vmem:[#allocation3 + $0x10] sm:$0xff]
        %v1061 = vld [vmem:[#allocation3 + $0x18] sm:$0xff]
        %v1062 = vrcp.pop %v1058
        %v1063 = vrcp.pop %v1059
        %v1064 = vrcp.pop %v1060
        %v1065 = vrcp.pop %v1061
        %v1066 = vld [vmem:[#allocation4] sm:$0xff]
        %v1067 = vld [vmem:[#allocation4 + $0x8] sm:$0xff]
        %v1068 = vld [vmem:[#allocation4 + $0x10] sm:$0xff]
        %v1069 = vld [vmem:[#allocation4 + $0x18] sm:$0xff]
        %1071 = vset.pattern.permute.xlu0 0
        %1072 = vperm.xlu0 %1071, %v1062
        %v1073 = vpop.permute.xlu0 %1072
        %1076 = vset.pattern.permute.xlu0 0
        %1077 = vperm.xlu0 %1076, %v1063
        %v1078 = vpop.permute.xlu0 %1077
        %1081 = vset.pattern.permute.xlu0 0
        %1082 = vperm.xlu0 %1081, %v1064
        %v1083 = vpop.permute.xlu0 %1082
        %1086 = vset.pattern.permute.xlu0 0
        %1087 = vperm.xlu0 %1086, %v1065
        %v1088 = vpop.permute.xlu0 %1087
        %v1090 = vmul.f32 %v1066, %v1073
        %v1091 = vmul.f32 %v1067, %v1078
        %v1092 = vmul.f32 %v1068, %v1083
        %v1093 = vmul.f32 %v1069, %v1088
        %vm1094 = vcmask 64512
        %1095 = vst.msk [vmem:[%s268] sm:$0xff] %vm1094, %v1090
        %1097 = vrot.lane.b32.xlu0 %v1091, 8
        %v1098 = vpop.permute.xlu0 %1097
        %vm1100 = vcmask 130112
        %1101 = vst.msk [vmem:[%s268] sm:$0xff] %vm1100, %v1098
        %1103 = vrot.lane.b32.xlu0 %v1092, 16
        %v1104 = vpop.permute.xlu0 %1103
        %vm1106 = vcmask 195712
        %1107 = vst.msk [vmem:[%s268] sm:$0xff] %vm1106, %v1104
        %1109 = vrot.lane.b32.xlu0 %v1093, 24
        %v1110 = vpop.permute.xlu0 %1109
        %vm1112 = vcmask 261312
        %1113 = vst.msk [vmem:[%s268] sm:$0xff] %vm1112, %v1110
      $region44: #{moss_attention_forward.4} parent=31 // pred_fallthru
        _
      %p1114 = scmp.lt.s32.totalorder %s19, 1
      %s1115 = scalar_select %p1114, %s19, 1
      %p1116 = scmp.lt.s32.totalorder %s20, 0
      %s1117 = scalar_select %p1116, %s20, 0
      %s1118 = sadd.s32 %s1117, %s1115
      %s1119 = smul.addr %s1118, 8
      %s1120 = scalar_lea.vmem %s3, %s1119
      // Predicated region
      $region45: #{moss_attention_forward.4} parent=31 // pred_check
        %p1121 = pneg %p137
      $region46: #{moss_attention_forward.4} parent=31 // pred_check_branch
        %1123 = sbr.rel (%p1121) target = $region48
      $region47: #{moss_attention_forward.4} parent=31 // pred_region
        _
      $region48: #{moss_attention_forward.4} parent=31 // pred_fallthru
        _
    $region32: #{moss_attention_forward.4} parent=5 // pred_fallthru
      _
    %p1124 = scmp.le.s32.totalorder 2, %s9
    // Predicated region
    $region49: #{moss_attention_forward.4} parent=5 // pred_check
      %p1125 = pneg %p1124
    $region50: #{moss_attention_forward.4} parent=5 // pred_check_branch
      %1127 = sbr.rel (%p1125) target = $region52
    $region51: #{moss_attention_forward.4} parent=5 // pred_region
      %s1128 = ssub.s32 %s9, 2
      // Predicated region
      $region53: #{moss_attention_forward.4} parent=51 // pred_check
        %p1129 = pneg %p143
      $region54: #{moss_attention_forward.4} parent=51 // pred_check_branch
        %1131 = sbr.rel (%p1129) target = $region56
      $region55: #{moss_attention_forward.4} parent=51 // pred_region
        %p1132 = scmp.lt.s32.totalorder %s22, 1
        %s1133 = scalar_select %p1132, %s22, 1
        %p1134 = scmp.lt.s32.totalorder %s23, 0
        %s1135 = scalar_select %p1134, %s23, 0
        %s1136 = sadd.s32 %s1135, %s1133
        %s1137 = smul.addr %s1136, 8
        %s1138 = scalar_lea.vmem %s3, %s1137
      $region56: #{moss_attention_forward.4} parent=51 // pred_fallthru
        _
    $region52: #{moss_attention_forward.4} parent=5 // pred_fallthru
      _
  $region6: #{moss_attention_forward.4} parent=0 // loop_footer
    %s13 = sadd.s32 1, %s9
  $region7: #{moss_attention_forward.4} parent=0 // loop_footer_branch
    %8 = sbr.rel target = $region3
  $region8: #{moss_attention_forward.4} parent=0 // loop_exit
    _

</llo_original>
